<compile_context>
chip_gen: v7x
topology: tpu7x:2x2x1
jax: 0.10.0
libtpu: 0.0.40
codegen_flags: <defaults>
</compile_context>

<pallas_src>
import jax
import jax.numpy as jnp
from jax import lax
from jax.experimental import pallas as pl
from jax.experimental.pallas import tpu as pltpu


TILE_V = 2048                     # vocab tile (multiple of 128)
_VMEM_LIMIT = 48 * 1024 * 1024    # scoped-VMEM budget (safe for v7x's 64 MiB)


def _round_up(x, m):
    return (x + m - 1) // m * m


def _pad_rows(x, b_pad, fill=0):
    pad = b_pad - x.shape[0]
    if pad <= 0:
        return x
    return jnp.concatenate(
        [x, jnp.full((pad,) + x.shape[1:], fill, x.dtype)], axis=0)


# --------------------------- kernel 1: decoder core ---------------------------

def _core_kernel(
    # data
    y_emb_ref, c_t_1_ref, h_prev_ref, c_prev_ref,
    enc_outs_ref, enc_feats_ref, mask_ref, cov_ref,
    # weights (pre-split / merged, bf16 matmul operands, f32 biases)
    xc_wc_ref, xc_wy_ref, xc_b_ref,
    w_x_ref, w_hh_ref, b_lstm_ref,
    w_h_ref, w_c_ref, w_ct_ref,
    ws_b_ref, op_b_ref, pg_b_ref,
    att_wc_ref, att_v_ref,
    # outputs
    h_out_ref, c_out_ref, ct_ref, attn_ref, cov_out_ref, pgen_ref, outh_ref,
):
    f32, bf16 = jnp.float32, jnp.bfloat16

    y_emb = y_emb_ref[...]                      # (B, E)  bf16
    c_t_1 = c_t_1_ref[...]                      # (B, 2H) f32
    h_prev = h_prev_ref[...]                    # (B, H)  f32
    c_prev = c_prev_ref[...]                    # (B, H)  f32
    B, H = h_prev.shape

    # ---- x_context: Linear(2H + E -> E), concat removed via split weights ----
    x_t = (jnp.dot(c_t_1.astype(bf16), xc_wc_ref[...], preferred_element_type=f32)
           + jnp.dot(y_emb, xc_wy_ref[...], preferred_element_type=f32)
           + xc_b_ref[...])                     # (B, E) f32

    # ---- single-step LSTM cell (gate order i, f, g, o); pg_x fused as col 4H --
    xg = jnp.dot(x_t.astype(bf16), w_x_ref[...], preferred_element_type=f32)  # (B, 4H+1)
    gates = (xg[:, :4 * H]
             + jnp.dot(h_prev.astype(bf16), w_hh_ref[...], preferred_element_type=f32)
             + b_lstm_ref[...])                 # (B, 4H)
    pg_from_x = xg[:, 4 * H:4 * H + 1]          # (B, 1)
    i_g = jax.nn.sigmoid(gates[:, 0:H])
    f_g = jax.nn.sigmoid(gates[:, H:2 * H])
    g_g = jnp.tanh(gates[:, 2 * H:3 * H])
    o_g = jax.nn.sigmoid(gates[:, 3 * H:4 * H])
    c_new = f_g * c_prev + i_g * g_g
    h_new = o_g * jnp.tanh(c_new)               # == lstm_out

    # ---- merged projections of h_new / c_new (Ws | out_proj | p_gen cols) ----
    h_proj = jnp.dot(h_new.astype(bf16), w_h_ref[...], preferred_element_type=f32)  # (B, 3H+1)
    c_proj = jnp.dot(c_new.astype(bf16), w_c_ref[...], preferred_element_type=f32)  # (B, 2H+1)
    dec_feats = h_proj[:, :2 * H] + c_proj[:, :2 * H] + ws_b_ref[...]               # (B, 2H)

    # ---- CovAttention ----
    cov = cov_ref[...]                          # (B, S)
    attn_feats = (enc_feats_ref[...] + dec_feats[:, None, :]
                  + cov[:, :, None] * att_wc_ref[0, :])         # (B, S, 2H) f32
    energy = jnp.sum(jnp.tanh(attn_feats) * att_v_ref[0, :], axis=2)   # (B, S)

    # masked + renormalised softmax (single EUP reciprocal).
    # Precondition (same as reference): each real row has at least one mask=1.
    mask = mask_ref[...]
    e_max = jnp.max(energy, axis=1, keepdims=True)
    e_exp = jnp.exp(energy - e_max) * mask
    a = e_exp * pl.reciprocal(jnp.sum(e_exp, axis=1, keepdims=True), approx=True)

    # context vector: VPU weighted sum (q=1 batched matmul wastes MXU passes)
    c_t = jnp.sum(a[:, :, None] * enc_outs_ref[...], axis=1)    # (B, 2H) f32

    # ---- c_t projection (out_proj col block | p_gen col) ----
    ct_proj = jnp.dot(c_t.astype(bf16), w_ct_ref[...], preferred_element_type=f32)  # (B, H+1)

    # ---- p_gen from fused columns ----
    p_gen = jax.nn.sigmoid(pg_from_x + h_proj[:, 3 * H:] + c_proj[:, 2 * H:]
                           + ct_proj[:, H:] + pg_b_ref[...])    # (B, 1)

    # ---- out_proj ----
    out_h = h_proj[:, 2 * H:3 * H] + ct_proj[:, :H] + op_b_ref[...]   # (B, H)

    h_out_ref[...] = h_new
    c_out_ref[...] = c_new
    ct_ref[...] = c_t
    attn_ref[...] = a
    cov_out_ref[...] = cov + a
    pgen_ref[...] = p_gen
    outh_ref[...] = out_h.astype(bf16)


# --------- kernel 2: fused tiled vocab logits + softmax + p_gen scale ---------

def _vocab_kernel(out_h_ref, w_ref, b_ref, pgen_ref, final_ref,
                  logits_sc, m_sc, l_sc):
    f32 = jnp.float32
    p = pl.program_id(0)   # 0: logits + online stats, 1: normalise + write
    j = pl.program_id(1)   # vocab tile

    @pl.when(jnp.logical_and(p == 0, j == 0))
    def _():
        m_sc[...] = jnp.full(m_sc.shape, -jnp.inf, f32)
        l_sc[...] = jnp.zeros(l_sc.shape, f32)

    @pl.when(p == 0)
    def _():
        logits = (jnp.dot(out_h_ref[...], w_ref[...], preferred_element_type=f32)
                  + b_ref[...])                               # (B, TILE_V)
        logits_sc[j] = logits
        t_m = jnp.max(logits, axis=1, keepdims=True)
        m_new = jnp.maximum(m_sc[...], t_m)
        l_sc[...] = (l_sc[...] * jnp.exp(m_sc[...] - m_new)
                     + jnp.sum(jnp.exp(logits - m_new), axis=1, keepdims=True))
        m_sc[...] = m_new

    @pl.when(p == 1)
    def _():
        inv_l = 1.0 / l_sc[...]    # exact divide; hidden under the HBM stream
        final_ref[...] = (pgen_ref[...]
                          * jnp.exp(logits_sc[j] - m_sc[...]) * inv_l)


# ------------------------------ param packing ---------------------------------

def pack_params(params, n_extra, tile_v=TILE_V):
    """Split / merge / cast / pad PyTorch-layout weights into kernel-ready form."""
    bf16, f32 = jnp.bfloat16, jnp.float32
    E = params["xc_b"].shape[1]
    H = params["op_b"].shape[1]
    V = params["out_w"].shape[1]
    V_ext_pad = _round_up(V + n_extra, tile_v)

    xc_w = params["xc_w"]     # (2H+E, E): rows [c_t_1(2H), y_emb(E)]
    ws_w = params["ws_w"]     # (2H, 2H):  rows [h(H), c(H)]
    pg_w = params["pgen_w"]   # (4H+E, 1): rows [c_t(2H), h(H), c(H), x_t(E)]
    op_w = params["op_w"]     # (3H, H):   rows [h(H), c_t(2H)]

    pg_ct = pg_w[:2 * H]
    pg_h = pg_w[2 * H:3 * H]
    pg_c = pg_w[3 * H:4 * H]
    pg_x = pg_w[4 * H:]
    ws_h, ws_c = ws_w[:H], ws_w[H:]
    op_h, op_c = op_w[:H], op_w[H:]

    # Merged MXU operands: fold the N=1 p_gen matvecs (and out_proj's h block)
    # into matmuls sharing the same LHS.
    w_x = jnp.concatenate([params["w_ih"], pg_x], axis=1)    # (E, 4H+1)
    w_h = jnp.concatenate([ws_h, op_h, pg_h], axis=1)        # (H, 3H+1)
    w_c = jnp.concatenate([ws_c, pg_c], axis=1)              # (H, 2H+1)
    w_ct = jnp.concatenate([op_c, pg_ct], axis=1)            # (2H, H+1)

    # vocab projection padded to the tiled extended vocab; pad columns get zero
    # weights and a -1e30 bias so they vanish in the softmax.  Pad width is
    # always < tile_v, so no vocab tile is all-pad.
    out_w_pad = (jnp.zeros((H, V_ext_pad), f32)
                 .at[:, :V].set(params["out_w"]).astype(bf16))
    out_b_pad = (jnp.full((1, V_ext_pad), -1e30, f32)
                 .at[:, :V].set(params["out_b"]))

    return {
        "vocab_size": int(V),
        "embed": params["embed"].astype(bf16),
        "xc_wc": xc_w[:2 * H].astype(bf16), "xc_wy": xc_w[2 * H:].astype(bf16),
        "xc_b": params["xc_b"].astype(f32),
        "w_x": w_x.astype(bf16), "w_hh": params["w_hh"].astype(bf16),
        "b_lstm": params["b_lstm"].astype(f32),
        "w_h": w_h.astype(bf16), "w_c": w_c.astype(bf16), "w_ct": w_ct.astype(bf16),
        "ws_b": params["ws_b"].astype(f32), "op_b": params["op_b"].astype(f32),
        "pg_b": params["pgen_b"].astype(f32),
        "att_wc": params["wc"].astype(f32), "att_v": params["v"].astype(f32),
        "out_w": out_w_pad, "out_b": out_b_pad,
    }


# -------------------------------- wrapper --------------------------------------

def decoder_step(packed, y_t, h_prev, c_prev, enc_outs, enc_feats,
                 enc_padding_mask, c_t_1, n_extra, enc_batch_extend_vocab,
                 coverage, *, tile_v=TILE_V):
    f32, bf16 = jnp.float32, jnp.bfloat16
    B, S, twoH = enc_outs.shape
    H = twoH // 2
    V = packed["vocab_size"]
    V_ext = V + n_extra
    V_ext_pad = packed["out_w"].shape[1]
    assert V_ext_pad >= V_ext and V_ext_pad % tile_v == 0
    n_tiles = V_ext_pad // tile_v
    B_pad = max(8, _round_up(B, 8))          # sublane-aligned batch

    # glue outside the kernels: embedding gather + batch padding
    y_emb = packed["embed"][y_t]                             # (B, E) bf16
    enc_feats3 = enc_feats.reshape(B, S, twoH)

    y_emb_p = _pad_rows(y_emb, B_pad)
    c_t_1_p = _pad_rows(c_t_1.astype(f32), B_pad)
    h_prev_p = _pad_rows(h_prev.astype(f32), B_pad)
    c_prev_p = _pad_rows(c_prev.astype(f32), B_pad)
    enc_outs_p = _pad_rows(enc_outs.astype(f32), B_pad)
    enc_feats_p = _pad_rows(enc_feats3.astype(f32), B_pad)
    mask_p = _pad_rows(enc_padding_mask.astype(f32), B_pad, fill=1.0)
    cov_p = _pad_rows(coverage.astype(f32), B_pad)

    # ---------------------------- pass 1: core ----------------------------
    # No grid: single invocation, whole arrays resident in VMEM, no pipeliner
    # double-buffering of enc_outs / enc_feats.
    core_inputs = [
        y_emb_p, c_t_1_p, h_prev_p, c_prev_p, enc_outs_p, enc_feats_p,
        mask_p, cov_p,
        packed["xc_wc"], packed["xc_wy"], packed["xc_b"],
        packed["w_x"], packed["w_hh"], packed["b_lstm"],
        packed["w_h"], packed["w_c"], packed["w_ct"],
        packed["ws_b"], packed["op_b"], packed["pg_b"],
        packed["att_wc"], packed["att_v"],
    ]
    core_out_shapes = (
        jax.ShapeDtypeStruct((B_pad, H), f32),       # h_t
        jax.ShapeDtypeStruct((B_pad, H), f32),       # c_t (LSTM cell)
        jax.ShapeDtypeStruct((B_pad, 2 * H), f32),   # context
        jax.ShapeDtypeStruct((B_pad, S), f32),       # attn
        jax.ShapeDtypeStruct((B_pad, S), f32),       # coverage_next
        jax.ShapeDtypeStruct((B_pad, 1), f32),       # p_gen
        jax.ShapeDtypeStruct((B_pad, H), bf16),      # out_h (pre-vocab hidden)
    )

    h_t, c_lstm, ctx, attn, cov_next, p_gen, out_h = pl.pallas_call(
        _core_kernel,
        out_shape=core_out_shapes,
        compiler_params=pltpu.CompilerParams(vmem_limit_bytes=_VMEM_LIMIT),
    )(*core_inputs)

    # ------------- pass 2: fused tiled vocab softmax (2 sweeps) -------------
    final_pad = pl.pallas_call(
        _vocab_kernel,
        out_shape=jax.ShapeDtypeStruct((B_pad, V_ext_pad), f32),
        grid=(2, n_tiles),
        in_specs=[
            pl.BlockSpec((B_pad, H), lambda p, j: (0, 0)),
            # stream weight tiles only during sweep 0; pin to tile 0 in sweep 1
            pl.BlockSpec((H, tile_v), lambda p, j: (0, j * (1 - p))),
            pl.BlockSpec((1, tile_v), lambda p, j: (0, j * (1 - p))),
            pl.BlockSpec((B_pad, 1), lambda p, j: (0, 0)),
        ],
        # output tiles only advance during sweep 1
        out_specs=pl.BlockSpec((B_pad, tile_v), lambda p, j: (0, j * p)),
        scratch_shapes=[
            pltpu.VMEM((n_tiles, B_pad, tile_v), f32),   # logits kept on-chip
            pltpu.VMEM((B_pad, 1), f32),                 # running max
            pltpu.VMEM((B_pad, 1), f32),                 # running sum
        ],
        compiler_params=pltpu.CompilerParams(
            dimension_semantics=("arbitrary", "arbitrary"),
            vmem_limit_bytes=_VMEM_LIMIT),
    )(out_h, packed["out_w"], packed["out_b"], p_gen)

    # --------- copy-distribution scatter_add in plain JAX (B*S updates) -------
    vocab_part = final_pad[:B, :V_ext]           # extra-vocab columns are 0
    attn_b = attn[:B]
    p_gen_b = p_gen[:B]
    rows = jnp.arange(B)[:, None]
    idx = enc_batch_extend_vocab.astype(jnp.int32)
    final = vocab_part.at[rows, idx].add((1.0 - p_gen_b) * attn_b)

    return (final, h_t[:B], c_lstm[:B], ctx[:B], attn_b, p_gen_b, cov_next[:B])


# ---------------------- deterministic parameter init --------------------------

def init_params(key, vocab_size, emb_dim, hid_dim):
    H, E, V = hid_dim, emb_dim, vocab_size
    ks = jax.random.split(key, 16)
    n = lambda k, shape: (jax.random.normal(k, shape, jnp.float32) * 0.1)
    return {
        "embed":  n(ks[0], (V, E)),
        "xc_w":   n(ks[1], (2 * H + E, E)),
        "xc_b":   n(ks[2], (1, E)),
        "w_ih":   n(ks[3], (E, 4 * H)),
        "w_hh":   n(ks[4], (H, 4 * H)),
        "b_lstm": n(ks[5], (1, 4 * H)),
        "ws_w":   n(ks[6], (2 * H, 2 * H)),
        "ws_b":   n(ks[7], (1, 2 * H)),
        "wc":     n(ks[8], (1, 2 * H)),
        "v":      n(ks[9], (1, 2 * H)),
        "pgen_w": n(ks[10], (4 * H + E, 1)),
        "pgen_b": n(ks[11], (1, 1)),
        "op_w":   n(ks[12], (3 * H, H)),
        "op_b":   n(ks[13], (1, H)),
        "out_w":  n(ks[14], (H, V)),
        "out_b":  n(ks[15], (1, V)),
    }


# --------------------------- pure-JAX reference --------------------------------

def decoder_ref(params, y_t, h_prev, c_prev, enc_outs, enc_feats, mask, c_t_1,
                n_extra, idx, coverage):
    B, S, twoH = enc_outs.shape
    H = twoH // 2
    y_emb = params["embed"][y_t]
    x_t = jnp.concatenate([c_t_1, y_emb], 1) @ params["xc_w"] + params["xc_b"]
    gates = x_t @ params["w_ih"] + h_prev @ params["w_hh"] + params["b_lstm"]
    i_g = jax.nn.sigmoid(gates[:, :H]); f_g = jax.nn.sigmoid(gates[:, H:2 * H])
    g_g = jnp.tanh(gates[:, 2 * H:3 * H]); o_g = jax.nn.sigmoid(gates[:, 3 * H:])
    c_new = f_g * c_prev + i_g * g_g
    h_new = o_g * jnp.tanh(c_new)
    s_t_hat = jnp.concatenate([h_new, c_new], 1)
    dec_feats = s_t_hat @ params["ws_w"] + params["ws_b"]
    attn_feats = (enc_feats.reshape(B, S, twoH) + dec_feats[:, None, :]
                  + coverage[:, :, None] * params["wc"][0])
    energy = jnp.sum(jnp.tanh(attn_feats) * params["v"][0], axis=2)
    a = jax.nn.softmax(energy, axis=1) * mask
    a = a / jnp.sum(a, 1, keepdims=True)
    c_t = jnp.sum(a[:, :, None] * enc_outs, axis=1)
    cov_next = coverage + a
    p_gen = jax.nn.sigmoid(
        jnp.concatenate([c_t, s_t_hat, x_t], 1) @ params["pgen_w"] + params["pgen_b"])
    out_h = jnp.concatenate([h_new, c_t], 1) @ params["op_w"] + params["op_b"]
    logits = out_h @ params["out_w"] + params["out_b"]
    vocab_dist = p_gen * jax.nn.softmax(logits, axis=1)
    attn_ = (1.0 - p_gen) * a
    vocab_padded = jnp.concatenate(
        [vocab_dist, jnp.zeros((B, n_extra), jnp.float32)], 1)
    final = vocab_padded.at[jnp.arange(B)[:, None], idx].add(attn_)
    return final, h_new, c_new, c_t, a, p_gen, cov_next


# ----------------------------------- main --------------------------------------

if __name__ == "__main__":
    B, S, E, H, V, n_extra = 2, 8, 16, 32, 64, 4

    root = jax.random.PRNGKey(0)
    k_param, k_data = jax.random.split(root)
    params = init_params(k_param, V, E, H)
    packed = pack_params(params, n_extra)

    kd = jax.random.split(k_data, 8)
    y_t = jax.random.randint(kd[0], (B,), 0, V)
    h_prev = jax.random.normal(kd[1], (B, H), jnp.float32) * 0.1
    c_prev = jax.random.normal(kd[2], (B, H), jnp.float32) * 0.1
    enc_outs = jax.random.normal(kd[3], (B, S, 2 * H), jnp.float32) * 0.1
    enc_feats = jax.random.normal(kd[4], (B * S, 2 * H), jnp.float32) * 0.1
    mask = (jax.random.uniform(kd[5], (B, S)) > 0.3).astype(jnp.float32)
    mask = mask.at[:, 0].set(1.0)  # at least one valid position per row
    c_t_1 = jnp.zeros((B, 2 * H), jnp.float32)
    coverage = jnp.zeros((B, S), jnp.float32)
    enc_batch_extend_vocab = jax.random.randint(kd[6], (B, S), 0, V + n_extra)

    outs = decoder_step(packed, y_t, h_prev, c_prev, enc_outs, enc_feats,
                        mask, c_t_1, n_extra, enc_batch_extend_vocab, coverage)
    outs = jax.block_until_ready(outs)

    refs = decoder_ref(params, y_t, h_prev, c_prev, enc_outs, enc_feats,
                       mask, c_t_1, n_extra, enc_batch_extend_vocab, coverage)

    names = ["final_dist", "h_t", "c_t_lstm", "context", "attn", "p_gen",
             "coverage"]
    # bf16 weights + approx attention reciprocal vs. f32 reference -> loose tol
    for name, o, r in zip(names, outs, refs):
        max_err = float(jnp.max(jnp.abs(o - r)))
        assert jnp.allclose(o, r, rtol=2e-2, atol=3e-3), \
            f"mismatch in {name} (max abs err {max_err})"

    # final_dist rows must be (approximately) valid probability distributions
    assert jnp.allclose(jnp.sum(outs[0], axis=1), 1.0, atol=5e-3)

    print("KERNEL_OK")
</pallas_src>

<mosaic_0001>
module attributes {stable_mosaic.version = 11 : i64} {
  func.func @_core_kernel(%arg0: memref<8x16xbf16, #tpu.memory_space<vmem>>, %arg1: memref<8x64xf32, #tpu.memory_space<vmem>>, %arg2: memref<8x32xf32, #tpu.memory_space<vmem>>, %arg3: memref<8x32xf32, #tpu.memory_space<vmem>>, %arg4: memref<8x8x64xf32, #tpu.memory_space<vmem>>, %arg5: memref<8x8x64xf32, #tpu.memory_space<vmem>>, %arg6: memref<8x8xf32, #tpu.memory_space<vmem>>, %arg7: memref<8x8xf32, #tpu.memory_space<vmem>>, %arg8: memref<64x16xbf16, #tpu.memory_space<vmem>>, %arg9: memref<16x16xbf16, #tpu.memory_space<vmem>>, %arg10: memref<1x16xf32, #tpu.memory_space<vmem>>, %arg11: memref<16x129xbf16, #tpu.memory_space<vmem>>, %arg12: memref<32x128xbf16, #tpu.memory_space<vmem>>, %arg13: memref<1x128xf32, #tpu.memory_space<vmem>>, %arg14: memref<32x97xbf16, #tpu.memory_space<vmem>>, %arg15: memref<32x65xbf16, #tpu.memory_space<vmem>>, %arg16: memref<64x33xbf16, #tpu.memory_space<vmem>>, %arg17: memref<1x64xf32, #tpu.memory_space<vmem>>, %arg18: memref<1x32xf32, #tpu.memory_space<vmem>>, %arg19: memref<1x1xf32, #tpu.memory_space<vmem>>, %arg20: memref<1x64xf32, #tpu.memory_space<vmem>>, %arg21: memref<1x64xf32, #tpu.memory_space<vmem>>, %arg22: memref<8x32xf32, #tpu.memory_space<vmem>>, %arg23: memref<8x32xf32, #tpu.memory_space<vmem>>, %arg24: memref<8x64xf32, #tpu.memory_space<vmem>>, %arg25: memref<8x8xf32, #tpu.memory_space<vmem>>, %arg26: memref<8x8xf32, #tpu.memory_space<vmem>>, %arg27: memref<8x1xf32, #tpu.memory_space<vmem>>, %arg28: memref<8x32xbf16, #tpu.memory_space<vmem>>) attributes {dimension_semantics = [], scalar_prefetch = 0 : i64, scratch_operands = 0 : i64, tpu.core_type = #tpu.core_type<tc>} {
    %c0 = arith.constant 0 : index
    %c0_0 = arith.constant 0 : index
    %0 = vector.load %arg0[%c0, %c0_0] : memref<8x16xbf16, #tpu.memory_space<vmem>>, vector<8x16xbf16>
    %c0_1 = arith.constant 0 : index
    %c0_2 = arith.constant 0 : index
    %1 = vector.load %arg1[%c0_1, %c0_2] : memref<8x64xf32, #tpu.memory_space<vmem>>, vector<8x64xf32>
    %c0_3 = arith.constant 0 : index
    %c0_4 = arith.constant 0 : index
    %2 = vector.load %arg2[%c0_3, %c0_4] : memref<8x32xf32, #tpu.memory_space<vmem>>, vector<8x32xf32>
    %c0_5 = arith.constant 0 : index
    %c0_6 = arith.constant 0 : index
    %3 = vector.load %arg3[%c0_5, %c0_6] : memref<8x32xf32, #tpu.memory_space<vmem>>, vector<8x32xf32>
    %4 = arith.truncf %1 : vector<8x64xf32> to vector<8x64xbf16>
    %c0_7 = arith.constant 0 : index
    %c0_8 = arith.constant 0 : index
    %5 = vector.load %arg8[%c0_7, %c0_8] : memref<64x16xbf16, #tpu.memory_space<vmem>>, vector<64x16xbf16>
    %cst = arith.constant dense<0.000000e+00> : vector<8x16xf32>
    %6 = tpu.matmul %4, %5, %cst {dimension_numbers = #tpu.dot_dimension_numbers<[1], [0], [0], [1], [0, 0, 1, 1], [], []>} : vector<8x64xbf16>, vector<64x16xbf16>, vector<8x16xf32> -> vector<8x16xf32>
    %c0_9 = arith.constant 0 : index
    %c0_10 = arith.constant 0 : index
    %7 = vector.load %arg9[%c0_9, %c0_10] : memref<16x16xbf16, #tpu.memory_space<vmem>>, vector<16x16xbf16>
    %cst_11 = arith.constant dense<0.000000e+00> : vector<8x16xf32>
    %8 = tpu.matmul %0, %7, %cst_11 {dimension_numbers = #tpu.dot_dimension_numbers<[1], [0], [0], [1], [0, 0, 1, 1], [], []>} : vector<8x16xbf16>, vector<16x16xbf16>, vector<8x16xf32> -> vector<8x16xf32>
    %9 = arith.addf %6, %8 : vector<8x16xf32>
    %c0_12 = arith.constant 0 : index
    %c0_13 = arith.constant 0 : index
    %10 = vector.load %arg10[%c0_12, %c0_13] : memref<1x16xf32, #tpu.memory_space<vmem>>, vector<1x16xf32>
    %11 = vector.broadcast %10 : vector<1x16xf32> to vector<8x16xf32>
    %12 = arith.addf %9, %11 : vector<8x16xf32>
    %13 = arith.truncf %12 : vector<8x16xf32> to vector<8x16xbf16>
    %c0_14 = arith.constant 0 : index
    %c0_15 = arith.constant 0 : index
    %14 = vector.load %arg11[%c0_14, %c0_15] : memref<16x129xbf16, #tpu.memory_space<vmem>>, vector<16x129xbf16>
    %cst_16 = arith.constant dense<0.000000e+00> : vector<8x129xf32>
    %15 = tpu.matmul %13, %14, %cst_16 {dimension_numbers = #tpu.dot_dimension_numbers<[1], [0], [0], [1], [0, 0, 1, 1], [], []>} : vector<8x16xbf16>, vector<16x129xbf16>, vector<8x129xf32> -> vector<8x129xf32>
    %16 = vector.extract_strided_slice %15 {offsets = [0, 0], sizes = [8, 128], strides = [1, 1]} : vector<8x129xf32> to vector<8x128xf32>
    %17 = arith.truncf %2 : vector<8x32xf32> to vector<8x32xbf16>
    %c0_17 = arith.constant 0 : index
    %c0_18 = arith.constant 0 : index
    %18 = vector.load %arg12[%c0_17, %c0_18] : memref<32x128xbf16, #tpu.memory_space<vmem>>, vector<32x128xbf16>
    %cst_19 = arith.constant dense<0.000000e+00> : vector<8x128xf32>
    %19 = tpu.matmul %17, %18, %cst_19 {dimension_numbers = #tpu.dot_dimension_numbers<[1], [0], [0], [1], [0, 0, 1, 1], [], []>} : vector<8x32xbf16>, vector<32x128xbf16>, vector<8x128xf32> -> vector<8x128xf32>
    %20 = arith.addf %16, %19 : vector<8x128xf32>
    %c0_20 = arith.constant 0 : index
    %c0_21 = arith.constant 0 : index
    %21 = vector.load %arg13[%c0_20, %c0_21] : memref<1x128xf32, #tpu.memory_space<vmem>>, vector<1x128xf32>
    %22 = vector.broadcast %21 : vector<1x128xf32> to vector<8x128xf32>
    %23 = arith.addf %20, %22 : vector<8x128xf32>
    %24 = vector.extract_strided_slice %15 {offsets = [0, 128], sizes = [8, 1], strides = [1, 1]} : vector<8x129xf32> to vector<8x1xf32>
    %25 = vector.extract_strided_slice %23 {offsets = [0, 0], sizes = [8, 32], strides = [1, 1]} : vector<8x128xf32> to vector<8x32xf32>
    %26 = arith.negf %25 : vector<8x32xf32>
    %27 = math.exp %26 : vector<8x32xf32>
    %cst_22 = arith.constant 1.000000e+00 : f32
    %28 = vector.broadcast %cst_22 : f32 to vector<8x32xf32>
    %29 = arith.addf %28, %27 : vector<8x32xf32>
    %30 = arith.divf %28, %29 : vector<8x32xf32>
    %31 = vector.extract_strided_slice %23 {offsets = [0, 32], sizes = [8, 32], strides = [1, 1]} : vector<8x128xf32> to vector<8x32xf32>
    %32 = arith.negf %31 : vector<8x32xf32>
    %33 = math.exp %32 : vector<8x32xf32>
    %cst_23 = arith.constant 1.000000e+00 : f32
    %34 = vector.broadcast %cst_23 : f32 to vector<8x32xf32>
    %35 = arith.addf %34, %33 : vector<8x32xf32>
    %36 = arith.divf %34, %35 : vector<8x32xf32>
    %37 = vector.extract_strided_slice %23 {offsets = [0, 64], sizes = [8, 32], strides = [1, 1]} : vector<8x128xf32> to vector<8x32xf32>
    %38 = math.tanh %37 : vector<8x32xf32>
    %39 = vector.extract_strided_slice %23 {offsets = [0, 96], sizes = [8, 32], strides = [1, 1]} : vector<8x128xf32> to vector<8x32xf32>
    %40 = arith.negf %39 : vector<8x32xf32>
    %41 = math.exp %40 : vector<8x32xf32>
    %cst_24 = arith.constant 1.000000e+00 : f32
    %42 = vector.broadcast %cst_24 : f32 to vector<8x32xf32>
    %43 = arith.addf %42, %41 : vector<8x32xf32>
    %44 = arith.divf %42, %43 : vector<8x32xf32>
    %45 = arith.mulf %36, %3 : vector<8x32xf32>
    %46 = arith.mulf %30, %38 : vector<8x32xf32>
    %47 = arith.addf %45, %46 : vector<8x32xf32>
    %48 = math.tanh %47 : vector<8x32xf32>
    %49 = arith.mulf %44, %48 : vector<8x32xf32>
    %50 = arith.truncf %49 : vector<8x32xf32> to vector<8x32xbf16>
    %c0_25 = arith.constant 0 : index
    %c0_26 = arith.constant 0 : index
    %51 = vector.load %arg14[%c0_25, %c0_26] : memref<32x97xbf16, #tpu.memory_space<vmem>>, vector<32x97xbf16>
    %cst_27 = arith.constant dense<0.000000e+00> : vector<8x97xf32>
    %52 = tpu.matmul %50, %51, %cst_27 {dimension_numbers = #tpu.dot_dimension_numbers<[1], [0], [0], [1], [0, 0, 1, 1], [], []>} : vector<8x32xbf16>, vector<32x97xbf16>, vector<8x97xf32> -> vector<8x97xf32>
    %53 = arith.truncf %47 : vector<8x32xf32> to vector<8x32xbf16>
    %c0_28 = arith.constant 0 : index
    %c0_29 = arith.constant 0 : index
    %54 = vector.load %arg15[%c0_28, %c0_29] : memref<32x65xbf16, #tpu.memory_space<vmem>>, vector<32x65xbf16>
    %cst_30 = arith.constant dense<0.000000e+00> : vector<8x65xf32>
    %55 = tpu.matmul %53, %54, %cst_30 {dimension_numbers = #tpu.dot_dimension_numbers<[1], [0], [0], [1], [0, 0, 1, 1], [], []>} : vector<8x32xbf16>, vector<32x65xbf16>, vector<8x65xf32> -> vector<8x65xf32>
    %56 = vector.extract_strided_slice %52 {offsets = [0, 0], sizes = [8, 64], strides = [1, 1]} : vector<8x97xf32> to vector<8x64xf32>
    %57 = vector.extract_strided_slice %55 {offsets = [0, 0], sizes = [8, 64], strides = [1, 1]} : vector<8x65xf32> to vector<8x64xf32>
    %58 = arith.addf %56, %57 : vector<8x64xf32>
    %c0_31 = arith.constant 0 : index
    %c0_32 = arith.constant 0 : index
    %59 = vector.load %arg17[%c0_31, %c0_32] : memref<1x64xf32, #tpu.memory_space<vmem>>, vector<1x64xf32>
    %60 = vector.broadcast %59 : vector<1x64xf32> to vector<8x64xf32>
    %61 = arith.addf %58, %60 : vector<8x64xf32>
    %c0_33 = arith.constant 0 : index
    %c0_34 = arith.constant 0 : index
    %62 = vector.load %arg7[%c0_33, %c0_34] : memref<8x8xf32, #tpu.memory_space<vmem>>, vector<8x8xf32>
    %c0_35 = arith.constant 0 : index
    %c0_36 = arith.constant 0 : index
    %c0_37 = arith.constant 0 : index
    %63 = vector.load %arg5[%c0_35, %c0_36, %c0_37] : memref<8x8x64xf32, #tpu.memory_space<vmem>>, vector<8x8x64xf32>
    %64 = vector.shape_cast %61 : vector<8x64xf32> to vector<8x1x64xf32>
    %65 = vector.broadcast %64 : vector<8x1x64xf32> to vector<8x8x64xf32>
    %66 = arith.addf %63, %65 : vector<8x8x64xf32>
    %67 = vector.shape_cast %62 : vector<8x8xf32> to vector<8x8x1xf32>
    %c0_38 = arith.constant 0 : index
    %c0_39 = arith.constant 0 : index
    %68 = vector.load %arg20[%c0_38, %c0_39] : memref<1x64xf32, #tpu.memory_space<vmem>>, vector<1x64xf32>
    %69 = vector.shape_cast %68 : vector<1x64xf32> to vector<64xf32>
    %70 = vector.shape_cast %69 : vector<64xf32> to vector<1x1x64xf32>
    %71 = vector.broadcast %67 : vector<8x8x1xf32> to vector<8x8x64xf32>
    %72 = vector.broadcast %70 : vector<1x1x64xf32> to vector<8x8x64xf32>
    %73 = arith.mulf %71, %72 : vector<8x8x64xf32>
    %74 = arith.addf %66, %73 : vector<8x8x64xf32>
    %75 = math.tanh %74 : vector<8x8x64xf32>
    %c0_40 = arith.constant 0 : index
    %c0_41 = arith.constant 0 : index
    %76 = vector.load %arg21[%c0_40, %c0_41] : memref<1x64xf32, #tpu.memory_space<vmem>>, vector<1x64xf32>
    %77 = vector.shape_cast %76 : vector<1x64xf32> to vector<64xf32>
    %78 = vector.shape_cast %77 : vector<64xf32> to vector<1x1x64xf32>
    %79 = vector.broadcast %78 : vector<1x1x64xf32> to vector<8x8x64xf32>
    %80 = arith.mulf %75, %79 : vector<8x8x64xf32>
    %cst_42 = arith.constant dense<0.000000e+00> : vector<8x8xf32>
    %81 = vector.multi_reduction <add>, %80, %cst_42 [2] : vector<8x8x64xf32> to vector<8x8xf32>
    %c0_43 = arith.constant 0 : index
    %c0_44 = arith.constant 0 : index
    %82 = vector.load %arg6[%c0_43, %c0_44] : memref<8x8xf32, #tpu.memory_space<vmem>>, vector<8x8xf32>
    %cst_45 = arith.constant dense<0xFF800000> : vector<8xf32>
    %83 = vector.multi_reduction <maximumf>, %81, %cst_45 [1] : vector<8x8xf32> to vector<8xf32>
    %84 = vector.shape_cast %83 : vector<8xf32> to vector<8x1xf32>
    %85 = vector.broadcast %84 : vector<8x1xf32> to vector<8x8xf32>
    %86 = arith.subf %81, %85 : vector<8x8xf32>
    %87 = math.exp %86 : vector<8x8xf32>
    %88 = arith.mulf %87, %82 : vector<8x8xf32>
    %cst_46 = arith.constant dense<0.000000e+00> : vector<8xf32>
    %89 = vector.multi_reduction <add>, %88, %cst_46 [1] : vector<8x8xf32> to vector<8xf32>
    %90 = vector.shape_cast %89 : vector<8xf32> to vector<8x1xf32>
    %91 = tpu.reciprocal %90 {approx = true} : vector<8x1xf32> -> vector<8x1xf32>
    %92 = vector.broadcast %91 : vector<8x1xf32> to vector<8x8xf32>
    %93 = arith.mulf %88, %92 : vector<8x8xf32>
    %94 = vector.shape_cast %93 : vector<8x8xf32> to vector<8x8x1xf32>
    %c0_47 = arith.constant 0 : index
    %c0_48 = arith.constant 0 : index
    %c0_49 = arith.constant 0 : index
    %95 = vector.load %arg4[%c0_47, %c0_48, %c0_49] : memref<8x8x64xf32, #tpu.memory_space<vmem>>, vector<8x8x64xf32>
    %96 = vector.broadcast %94 : vector<8x8x1xf32> to vector<8x8x64xf32>
    %97 = arith.mulf %96, %95 : vector<8x8x64xf32>
    %cst_50 = arith.constant dense<0.000000e+00> : vector<8x64xf32>
    %98 = vector.multi_reduction <add>, %97, %cst_50 [1] : vector<8x8x64xf32> to vector<8x64xf32>
    %99 = arith.truncf %98 : vector<8x64xf32> to vector<8x64xbf16>
    %c0_51 = arith.constant 0 : index
    %c0_52 = arith.constant 0 : index
    %100 = vector.load %arg16[%c0_51, %c0_52] : memref<64x33xbf16, #tpu.memory_space<vmem>>, vector<64x33xbf16>
    %cst_53 = arith.constant dense<0.000000e+00> : vector<8x33xf32>
    %101 = tpu.matmul %99, %100, %cst_53 {dimension_numbers = #tpu.dot_dimension_numbers<[1], [0], [0], [1], [0, 0, 1, 1], [], []>} : vector<8x64xbf16>, vector<64x33xbf16>, vector<8x33xf32> -> vector<8x33xf32>
    %102 = vector.extract_strided_slice %52 {offsets = [0, 96], sizes = [8, 1], strides = [1, 1]} : vector<8x97xf32> to vector<8x1xf32>
    %103 = arith.addf %24, %102 : vector<8x1xf32>
    %104 = vector.extract_strided_slice %55 {offsets = [0, 64], sizes = [8, 1], strides = [1, 1]} : vector<8x65xf32> to vector<8x1xf32>
    %105 = arith.addf %103, %104 : vector<8x1xf32>
    %106 = vector.extract_strided_slice %101 {offsets = [0, 32], sizes = [8, 1], strides = [1, 1]} : vector<8x33xf32> to vector<8x1xf32>
    %107 = arith.addf %105, %106 : vector<8x1xf32>
    %c0_54 = arith.constant 0 : index
    %c0_55 = arith.constant 0 : index
    %108 = vector.load %arg19[%c0_54, %c0_55] : memref<1x1xf32, #tpu.memory_space<vmem>>, vector<1x1xf32>
    %109 = vector.broadcast %108 : vector<1x1xf32> to vector<8x1xf32>
    %110 = arith.addf %107, %109 : vector<8x1xf32>
    %111 = arith.negf %110 : vector<8x1xf32>
    %112 = math.exp %111 : vector<8x1xf32>
    %cst_56 = arith.constant 1.000000e+00 : f32
    %113 = vector.broadcast %cst_56 : f32 to vector<8x1xf32>
    %114 = arith.addf %113, %112 : vector<8x1xf32>
    %115 = arith.divf %113, %114 : vector<8x1xf32>
    %116 = vector.extract_strided_slice %52 {offsets = [0, 64], sizes = [8, 32], strides = [1, 1]} : vector<8x97xf32> to vector<8x32xf32>
    %117 = vector.extract_strided_slice %101 {offsets = [0, 0], sizes = [8, 32], strides = [1, 1]} : vector<8x33xf32> to vector<8x32xf32>
    %118 = arith.addf %116, %117 : vector<8x32xf32>
    %c0_57 = arith.constant 0 : index
    %c0_58 = arith.constant 0 : index
    %119 = vector.load %arg18[%c0_57, %c0_58] : memref<1x32xf32, #tpu.memory_space<vmem>>, vector<1x32xf32>
    %120 = vector.broadcast %119 : vector<1x32xf32> to vector<8x32xf32>
    %121 = arith.addf %118, %120 : vector<8x32xf32>
    %c0_59 = arith.constant 0 : index
    %c0_60 = arith.constant 0 : index
    %122 = vector.load %arg22[%c0_59, %c0_60] : memref<8x32xf32, #tpu.memory_space<vmem>>, vector<8x32xf32>
    tpu.vector_store %arg22[%c0_59, %c0_60], %49 {strides = array<i32>} : memref<8x32xf32, #tpu.memory_space<vmem>>, vector<8x32xf32>,
    %c0_61 = arith.constant 0 : index
    %c0_62 = arith.constant 0 : index
    %123 = vector.load %arg23[%c0_61, %c0_62] : memref<8x32xf32, #tpu.memory_space<vmem>>, vector<8x32xf32>
    tpu.vector_store %arg23[%c0_61, %c0_62], %47 {strides = array<i32>} : memref<8x32xf32, #tpu.memory_space<vmem>>, vector<8x32xf32>,
    %c0_63 = arith.constant 0 : index
    %c0_64 = arith.constant 0 : index
    %124 = vector.load %arg24[%c0_63, %c0_64] : memref<8x64xf32, #tpu.memory_space<vmem>>, vector<8x64xf32>
    tpu.vector_store %arg24[%c0_63, %c0_64], %98 {strides = array<i32>} : memref<8x64xf32, #tpu.memory_space<vmem>>, vector<8x64xf32>,
    %c0_65 = arith.constant 0 : index
    %c0_66 = arith.constant 0 : index
    %125 = vector.load %arg25[%c0_65, %c0_66] : memref<8x8xf32, #tpu.memory_space<vmem>>, vector<8x8xf32>
    tpu.vector_store %arg25[%c0_65, %c0_66], %93 {strides = array<i32>} : memref<8x8xf32, #tpu.memory_space<vmem>>, vector<8x8xf32>,
    %126 = arith.addf %62, %93 : vector<8x8xf32>
    %c0_67 = arith.constant 0 : index
    %c0_68 = arith.constant 0 : index
    %127 = vector.load %arg26[%c0_67, %c0_68] : memref<8x8xf32, #tpu.memory_space<vmem>>, vector<8x8xf32>
    tpu.vector_store %arg26[%c0_67, %c0_68], %126 {strides = array<i32>} : memref<8x8xf32, #tpu.memory_space<vmem>>, vector<8x8xf32>,
    %c0_69 = arith.constant 0 : index
    %c0_70 = arith.constant 0 : index
    %128 = vector.load %arg27[%c0_69, %c0_70] : memref<8x1xf32, #tpu.memory_space<vmem>>, vector<8x1xf32>
    tpu.vector_store %arg27[%c0_69, %c0_70], %115 {strides = array<i32>} : memref<8x1xf32, #tpu.memory_space<vmem>>, vector<8x1xf32>,
    %129 = arith.truncf %121 : vector<8x32xf32> to vector<8x32xbf16>
    %c0_71 = arith.constant 0 : index
    %c0_72 = arith.constant 0 : index
    %130 = vector.load %arg28[%c0_71, %c0_72] : memref<8x32xbf16, #tpu.memory_space<vmem>>, vector<8x32xbf16>
    tpu.vector_store %arg28[%c0_71, %c0_72], %129 {strides = array<i32>} : memref<8x32xbf16, #tpu.memory_space<vmem>>, vector<8x32xbf16>,
    return
  }
}

</mosaic_0001>

<llo_original>
// kernel: tpu_custom_call.1
$region0: #{tpu_custom_call.1}
  #allocation0 [shape = 'u32[]', space=smem, size = 0x4, offset = 0x4, fixed_abs, tag = 'smem constant byte address 0x4 - core index']
  #allocation1 [shape = 'u32[144,128]{1,0:T(1,128)}', space=vmem, size = 0x12000, scoped, tag = 'internal scratch']
  #allocation2 [shape = 'f32[1,1]{1,0:T(1,128)S(1)}', space=vmem, size = 0x200, scoped, tag = 'scoped memory for tpu_custom_call.1']
  %s0 = inlined_call_operand.hbm [shape: bf16[8,16], index: 0, kind: input, shape index: {}]
  %s1 = inlined_call_operand.hbm [shape: f32[8,64], index: 1, kind: input, shape index: {}]
  %s2 = inlined_call_operand.hbm [shape: f32[8,32], index: 2, kind: input, shape index: {}]
  %s3 = inlined_call_operand.hbm [shape: f32[8,32], index: 3, kind: input, shape index: {}]
  %s4 = inlined_call_operand.vmem [shape: f32[8,8,64], index: 4, kind: input, shape index: {}]
  %s5 = inlined_call_operand.hbm [shape: f32[8,8,64], index: 5, kind: input, shape index: {}]
  %s6 = inlined_call_operand.hbm [shape: f32[8,8], index: 6, kind: input, shape index: {}]
  %s7 = inlined_call_operand.hbm [shape: f32[8,8], index: 7, kind: input, shape index: {}]
  %s8 = inlined_call_operand.vmem [shape: bf16[64,16], index: 8, kind: input, shape index: {}]
  %s9 = inlined_call_operand.hbm [shape: bf16[16,16], index: 9, kind: input, shape index: {}]
  %s10 = inlined_call_operand.hbm [shape: f32[1,16], index: 10, kind: input, shape index: {}]
  %s11 = inlined_call_operand.vmem [shape: bf16[16,129], index: 11, kind: input, shape index: {}]
  %s12 = inlined_call_operand.vmem [shape: bf16[32,128], index: 12, kind: input, shape index: {}]
  %s13 = inlined_call_operand.hbm [shape: f32[1,128], index: 13, kind: input, shape index: {}]
  %s14 = inlined_call_operand.vmem [shape: bf16[32,97], index: 14, kind: input, shape index: {}]
  %s15 = inlined_call_operand.vmem [shape: bf16[32,65], index: 15, kind: input, shape index: {}]
  %s16 = inlined_call_operand.vmem [shape: bf16[64,33], index: 16, kind: input, shape index: {}]
  %s17 = inlined_call_operand.vmem [shape: f32[1,64], index: 17, kind: input, shape index: {}]
  %s18 = inlined_call_operand.vmem [shape: f32[1,32], index: 18, kind: input, shape index: {}]
  %s19 = inlined_call_operand.<no memory space> [shape: f32[1,1], index: 19, kind: input, shape index: {}]
  %s20 = inlined_call_operand.vmem [shape: f32[1,64], index: 20, kind: input, shape index: {}]
  %s21 = inlined_call_operand.vmem [shape: f32[1,64], index: 21, kind: input, shape index: {}]
  %s22 = inlined_call_operand.hbm [shape: f32[8,32], index: 22, kind: output, shape index: {0}]
  %s23 = inlined_call_operand.hbm [shape: f32[8,32], index: 23, kind: output, shape index: {1}]
  %s24 = inlined_call_operand.hbm [shape: f32[8,64], index: 24, kind: output, shape index: {2}]
  %s25 = inlined_call_operand.hbm [shape: f32[8,8], index: 25, kind: output, shape index: {3}]
  %s26 = inlined_call_operand.hbm [shape: f32[8,8], index: 26, kind: output, shape index: {4}]
  %s27 = inlined_call_operand.vmem [shape: f32[8,1], index: 27, kind: output, shape index: {5}]
  %s28 = inlined_call_operand.hbm [shape: bf16[8,32], index: 28, kind: output, shape index: {6}]
  %29 = xla_tuple %s22, %s23, %s24, %s25, %s26, %s27, %s28
  %s30 = sld [smem:[#allocation0]]
  $region186: #{tpu_custom_call.1} parent=0
    _
  %s32 = ssub.s32 1, %s30
  %s33 = scalar_select 0, %s32, %s30
  %v34 = vstv %s19
  %35 = vst [vmem:[#allocation2] sm:$0x1] %v34
  $region1: #{tpu_custom_call.1} parent=0
    #allocation3 [shape = 'u8[2048]{0}', space=vmem, size = 0x800, scoped, tag = 'input window, operand 0, single buffered']
    #allocation4 [shape = 's32[1]{0}', space=sflag, size = 0x4, scoped, tag = 'scoped memory for tpu_custom_call.1']
    #allocation5 [shape = 's32[1]{0}', space=sflag, size = 0x4, scoped, tag = 'scoped memory for tpu_custom_call.1']
    #allocation6 [shape = 'u8[4096]{0}', space=vmem, size = 0x1000, scoped, tag = 'input window, operand 1, single buffered']
    #allocation7 [shape = 's32[1]{0}', space=sflag, size = 0x4, scoped, tag = 'scoped memory for tpu_custom_call.1']
    #allocation8 [shape = 'u8[4096]{0}', space=vmem, size = 0x1000, scoped, tag = 'input window, operand 2, single buffered']
    #allocation9 [shape = 'u8[4096]{0}', space=vmem, size = 0x1000, scoped, tag = 'input window, operand 3, single buffered']
    #allocation10 [shape = 's32[1]{0}', space=sflag, size = 0x4, scoped, tag = 'scoped memory for tpu_custom_call.1']
    #allocation11 [shape = 'u8[32768]{0}', space=vmem, size = 0x8000, scoped, tag = 'input window, operand 5, single buffered']
    #allocation12 [shape = 'u8[4096]{0}', space=vmem, size = 0x1000, scoped, tag = 'input window, operand 6, single buffered']
    #allocation13 [shape = 's32[1]{0}', space=sflag, size = 0x4, scoped, tag = 'scoped memory for tpu_custom_call.1']
    #allocation14 [shape = 'u8[4096]{0}', space=vmem, size = 0x1000, scoped, tag = 'input window, operand 7, single buffered']
    #allocation15 [shape = 'u8[4096]{0}', space=vmem, size = 0x1000, scoped, tag = 'input window, operand 9, single buffered']
    #allocation16 [shape = 's32[1]{0}', space=sflag, size = 0x4, scoped, tag = 'scoped memory for tpu_custom_call.1']
    #allocation17 [shape = 'u8[512]{0}', space=vmem, size = 0x400, scoped, tag = 'input window, operand 10, single buffered']
    #allocation18 [shape = 'u8[512]{0}', space=vmem, size = 0x400, scoped, tag = 'input window, operand 13, single buffered']
    #allocation19 [shape = 's32[1]{0}', space=sflag, size = 0x4, scoped, tag = 'scoped memory for tpu_custom_call.1']
    #allocation20 [shape = 'u8[4096]{0}', space=vmem, size = 0x1000, scoped, tag = 'output window, operand 0, single buffered']
    #allocation21 [shape = 'u8[4096]{0}', space=vmem, size = 0x1000, scoped, tag = 'output window, operand 1, single buffered']
    #allocation22 [shape = 's32[1]{0}', space=sflag, size = 0x4, scoped, tag = 'scoped memory for tpu_custom_call.1']
    #allocation23 [shape = 'u8[4096]{0}', space=vmem, size = 0x1000, scoped, tag = 'output window, operand 2, single buffered']
    #allocation24 [shape = 'u8[4096]{0}', space=vmem, size = 0x1000, scoped, tag = 'output window, operand 3, single buffered']
    #allocation25 [shape = 's32[1]{0}', space=sflag, size = 0x4, scoped, tag = 'scoped memory for tpu_custom_call.1']
    #allocation26 [shape = 'u8[4096]{0}', space=vmem, size = 0x1000, scoped, tag = 'output window, operand 4, single buffered']
    #allocation27 [shape = 'u8[2048]{0}', space=vmem, size = 0x800, scoped, tag = 'output window, operand 6, single buffered']
    #allocation28 [shape = 's32[1]{0}', space=sflag, size = 0x4, scoped, tag = 'scoped memory for tpu_custom_call.1']
    %36 = vsyncpa [#allocation4], 0
    %37 = vsyncpa [#allocation7], 0
    %38 = vsyncpa [#allocation10], 0
    %39 = vsyncpa [#allocation13], 0
    %40 = vsyncpa [#allocation16], 0
    %41 = vsyncpa [#allocation19], 0
    %42 = vsyncpa [#allocation5], 0
    %43 = vsyncpa [#allocation22], 0
    %44 = vsyncpa [#allocation25], 0
    %45 = vsyncpa [#allocation28], 0
    // Predicated region
    $region2: #{tpu_custom_call.1} parent=1 // pred_check
      _
    $region3: #{tpu_custom_call.1} parent=1 // pred_check_branch
      %47 = sbr.rel (0) target = $region5
    $region4: #{tpu_custom_call.1} parent=1 // pred_region
      %s49 = ssub.s32 64, 64
      %50 = vsyncadd [#allocation4], %s49
      %s52 = sshll.u32 [#allocation3], 4
      %s53 = int_to_ptr.vmem [resolvable:$true] %s52
      %55 = dma.hbm_to_vmem [thread:$0]  %s0, 64, %s53, [#allocation4]
    $region5: #{tpu_custom_call.1} parent=1 // pred_fallthru
      _
    // Predicated region
    $region6: #{tpu_custom_call.1} parent=1 // pred_check
      _
    $region7: #{tpu_custom_call.1} parent=1 // pred_check_branch
      %57 = sbr.rel (0) target = $region9
    $region8: #{tpu_custom_call.1} parent=1 // pred_region
      %s59 = ssub.s32 128, 128
      %60 = vsyncadd [#allocation7], %s59
      %s62 = sshll.u32 [#allocation6], 4
      %s63 = int_to_ptr.vmem [resolvable:$true] %s62
      %65 = dma.hbm_to_vmem [thread:$0]  %s1, 128, %s63, [#allocation7]
    $region9: #{tpu_custom_call.1} parent=1 // pred_fallthru
      _
    // Predicated region
    $region10: #{tpu_custom_call.1} parent=1 // pred_check
      _
    $region11: #{tpu_custom_call.1} parent=1 // pred_check_branch
      %67 = sbr.rel (0) target = $region13
    $region12: #{tpu_custom_call.1} parent=1 // pred_region
      %s69 = ssub.s32 128, 128
      %70 = vsyncadd [#allocation7], %s69
      %s72 = sshll.u32 [#allocation8], 4
      %s73 = int_to_ptr.vmem [resolvable:$true] %s72
      %75 = dma.hbm_to_vmem [thread:$0]  %s2, 128, %s73, [#allocation7]
    $region13: #{tpu_custom_call.1} parent=1 // pred_fallthru
      _
    // Predicated region
    $region14: #{tpu_custom_call.1} parent=1 // pred_check
      _
    $region15: #{tpu_custom_call.1} parent=1 // pred_check_branch
      %77 = sbr.rel (0) target = $region17
    $region16: #{tpu_custom_call.1} parent=1 // pred_region
      %s79 = ssub.s32 128, 128
      %80 = vsyncadd [#allocation10], %s79
      %s82 = sshll.u32 [#allocation9], 4
      %s83 = int_to_ptr.vmem [resolvable:$true] %s82
      %85 = dma.hbm_to_vmem [thread:$0]  %s3, 128, %s83, [#allocation10]
    $region17: #{tpu_custom_call.1} parent=1 // pred_fallthru
      _
    // Predicated region
    $region18: #{tpu_custom_call.1} parent=1 // pred_check
      _
    $region19: #{tpu_custom_call.1} parent=1 // pred_check_branch
      %87 = sbr.rel (0) target = $region21
    $region20: #{tpu_custom_call.1} parent=1 // pred_region
      _
    $region21: #{tpu_custom_call.1} parent=1 // pred_fallthru
      _
    // Predicated region
    $region22: #{tpu_custom_call.1} parent=1 // pred_check
      _
    $region23: #{tpu_custom_call.1} parent=1 // pred_check_branch
      %89 = sbr.rel (0) target = $region25
    $region24: #{tpu_custom_call.1} parent=1 // pred_region
      %s91 = ssub.s32 1024, 1024
      %92 = vsyncadd [#allocation10], %s91
      %s93 = sshll.u32 [#allocation11], 4
      %s94 = int_to_ptr.vmem [resolvable:$true] %s93
      %99 = dma.hbm_to_vmem [thread:$0]  %s5, 1024, %s94, [#allocation10], 128, 128, 8
    $region25: #{tpu_custom_call.1} parent=1 // pred_fallthru
      _
    // Predicated region
    $region26: #{tpu_custom_call.1} parent=1 // pred_check
      _
    $region27: #{tpu_custom_call.1} parent=1 // pred_check_branch
      %101 = sbr.rel (0) target = $region29
    $region28: #{tpu_custom_call.1} parent=1 // pred_region
      %s103 = ssub.s32 128, 128
      %104 = vsyncadd [#allocation13], %s103
      %s106 = sshll.u32 [#allocation12], 4
      %s107 = int_to_ptr.vmem [resolvable:$true] %s106
      %109 = dma.hbm_to_vmem [thread:$0]  %s6, 128, %s107, [#allocation13]
    $region29: #{tpu_custom_call.1} parent=1 // pred_fallthru
      _
    // Predicated region
    $region30: #{tpu_custom_call.1} parent=1 // pred_check
      _
    $region31: #{tpu_custom_call.1} parent=1 // pred_check_branch
      %111 = sbr.rel (0) target = $region33
    $region32: #{tpu_custom_call.1} parent=1 // pred_region
      %s113 = ssub.s32 128, 128
      %114 = vsyncadd [#allocation13], %s113
      %s116 = sshll.u32 [#allocation14], 4
      %s117 = int_to_ptr.vmem [resolvable:$true] %s116
      %119 = dma.hbm_to_vmem [thread:$0]  %s7, 128, %s117, [#allocation13]
    $region33: #{tpu_custom_call.1} parent=1 // pred_fallthru
      _
    // Predicated region
    $region34: #{tpu_custom_call.1} parent=1 // pred_check
      _
    $region35: #{tpu_custom_call.1} parent=1 // pred_check_branch
      %121 = sbr.rel (0) target = $region37
    $region36: #{tpu_custom_call.1} parent=1 // pred_region
      _
    $region37: #{tpu_custom_call.1} parent=1 // pred_fallthru
      _
    // Predicated region
    $region38: #{tpu_custom_call.1} parent=1 // pred_check
      _
    $region39: #{tpu_custom_call.1} parent=1 // pred_check_branch
      %123 = sbr.rel (0) target = $region41
    $region40: #{tpu_custom_call.1} parent=1 // pred_region
      %s125 = ssub.s32 128, 128
      %126 = vsyncadd [#allocation16], %s125
      %s127 = sshll.u32 [#allocation15], 4
      %s128 = int_to_ptr.vmem [resolvable:$true] %s127
      %133 = dma.hbm_to_vmem [thread:$0]  %s9, 128, %s128, [#allocation16], 64, 64, 4
    $region41: #{tpu_custom_call.1} parent=1 // pred_fallthru
      _
    // Predicated region
    $region42: #{tpu_custom_call.1} parent=1 // pred_check
      _
    $region43: #{tpu_custom_call.1} parent=1 // pred_check_branch
      %135 = sbr.rel (0) target = $region45
    $region44: #{tpu_custom_call.1} parent=1 // pred_region
      %s137 = ssub.s32 16, 16
      %138 = vsyncadd [#allocation16], %s137
      %s140 = sshll.u32 [#allocation17], 4
      %s141 = int_to_ptr.vmem [resolvable:$true] %s140
      %143 = dma.hbm_to_vmem [thread:$0]  %s10, 16, %s141, [#allocation16]
    $region45: #{tpu_custom_call.1} parent=1 // pred_fallthru
      _
    // Predicated region
    $region46: #{tpu_custom_call.1} parent=1 // pred_check
      _
    $region47: #{tpu_custom_call.1} parent=1 // pred_check_branch
      %145 = sbr.rel (0) target = $region49
    $region48: #{tpu_custom_call.1} parent=1 // pred_region
      _
    $region49: #{tpu_custom_call.1} parent=1 // pred_fallthru
      _
    // Predicated region
    $region50: #{tpu_custom_call.1} parent=1 // pred_check
      _
    $region51: #{tpu_custom_call.1} parent=1 // pred_check_branch
      %147 = sbr.rel (0) target = $region53
    $region52: #{tpu_custom_call.1} parent=1 // pred_region
      _
    $region53: #{tpu_custom_call.1} parent=1 // pred_fallthru
      _
    // Predicated region
    $region54: #{tpu_custom_call.1} parent=1 // pred_check
      _
    $region55: #{tpu_custom_call.1} parent=1 // pred_check_branch
      %149 = sbr.rel (0) target = $region57
    $region56: #{tpu_custom_call.1} parent=1 // pred_region
      %s151 = ssub.s32 16, 16
      %152 = vsyncadd [#allocation19], %s151
      %s154 = sshll.u32 [#allocation18], 4
      %s155 = int_to_ptr.vmem [resolvable:$true] %s154
      %157 = dma.hbm_to_vmem [thread:$0]  %s13, 16, %s155, [#allocation19]
    $region57: #{tpu_custom_call.1} parent=1 // pred_fallthru
      _
    // Predicated region
    $region58: #{tpu_custom_call.1} parent=1 // pred_check
      _
    $region59: #{tpu_custom_call.1} parent=1 // pred_check_branch
      %159 = sbr.rel (0) target = $region61
    $region60: #{tpu_custom_call.1} parent=1 // pred_region
      _
    $region61: #{tpu_custom_call.1} parent=1 // pred_fallthru
      _
    // Predicated region
    $region62: #{tpu_custom_call.1} parent=1 // pred_check
      _
    $region63: #{tpu_custom_call.1} parent=1 // pred_check_branch
      %161 = sbr.rel (0) target = $region65
    $region64: #{tpu_custom_call.1} parent=1 // pred_region
      _
    $region65: #{tpu_custom_call.1} parent=1 // pred_fallthru
      _
    // Predicated region
    $region66: #{tpu_custom_call.1} parent=1 // pred_check
      _
    $region67: #{tpu_custom_call.1} parent=1 // pred_check_branch
      %163 = sbr.rel (0) target = $region69
    $region68: #{tpu_custom_call.1} parent=1 // pred_region
      _
    $region69: #{tpu_custom_call.1} parent=1 // pred_fallthru
      _
    // Predicated region
    $region70: #{tpu_custom_call.1} parent=1 // pred_check
      _
    $region71: #{tpu_custom_call.1} parent=1 // pred_check_branch
      %165 = sbr.rel (0) target = $region73
    $region72: #{tpu_custom_call.1} parent=1 // pred_region
      _
    $region73: #{tpu_custom_call.1} parent=1 // pred_fallthru
      _
    // Predicated region
    $region74: #{tpu_custom_call.1} parent=1 // pred_check
      _
    $region75: #{tpu_custom_call.1} parent=1 // pred_check_branch
      %167 = sbr.rel (0) target = $region77
    $region76: #{tpu_custom_call.1} parent=1 // pred_region
      _
    $region77: #{tpu_custom_call.1} parent=1 // pred_fallthru
      _
    // Predicated region
    $region78: #{tpu_custom_call.1} parent=1 // pred_check
      _
    $region79: #{tpu_custom_call.1} parent=1 // pred_check_branch
      %169 = sbr.rel (0) target = $region81
    $region80: #{tpu_custom_call.1} parent=1 // pred_region
      _
    $region81: #{tpu_custom_call.1} parent=1 // pred_fallthru
      _
    // Predicated region
    $region82: #{tpu_custom_call.1} parent=1 // pred_check
      _
    $region83: #{tpu_custom_call.1} parent=1 // pred_check_branch
      %171 = sbr.rel (0) target = $region85
    $region84: #{tpu_custom_call.1} parent=1 // pred_region
      _
    $region85: #{tpu_custom_call.1} parent=1 // pred_fallthru
      _
    // Predicated region
    $region86: #{tpu_custom_call.1} parent=1 // pred_check
      _
    $region87: #{tpu_custom_call.1} parent=1 // pred_check_branch
      %173 = sbr.rel (0) target = $region89
    $region88: #{tpu_custom_call.1} parent=1 // pred_region
      _
    $region89: #{tpu_custom_call.1} parent=1 // pred_fallthru
      _
    // Predicated region
    $region90: #{tpu_custom_call.1} parent=1 // pred_check
      _
    $region91: #{tpu_custom_call.1} parent=1 // pred_check_branch
      %175 = sbr.rel (0) target = $region93
    $region92: #{tpu_custom_call.1} parent=1 // pred_region
      %176 = dma.done [#allocation4], 64
    $region93: #{tpu_custom_call.1} parent=1 // pred_fallthru
      _
    // Predicated region
    $region94: #{tpu_custom_call.1} parent=1 // pred_check
      _
    $region95: #{tpu_custom_call.1} parent=1 // pred_check_branch
      %178 = sbr.rel (0) target = $region97
    $region96: #{tpu_custom_call.1} parent=1 // pred_region
      %179 = dma.done [#allocation7], 128
    $region97: #{tpu_custom_call.1} parent=1 // pred_fallthru
      _
    // Predicated region
    $region98: #{tpu_custom_call.1} parent=1 // pred_check
      _
    $region99: #{tpu_custom_call.1} parent=1 // pred_check_branch
      %181 = sbr.rel (0) target = $region101
    $region100: #{tpu_custom_call.1} parent=1 // pred_region
      %182 = dma.done [#allocation7], 128
    $region101: #{tpu_custom_call.1} parent=1 // pred_fallthru
      _
    // Predicated region
    $region102: #{tpu_custom_call.1} parent=1 // pred_check
      _
    $region103: #{tpu_custom_call.1} parent=1 // pred_check_branch
      %184 = sbr.rel (0) target = $region105
    $region104: #{tpu_custom_call.1} parent=1 // pred_region
      %185 = dma.done [#allocation10], 128
    $region105: #{tpu_custom_call.1} parent=1 // pred_fallthru
      _
    // Predicated region
    $region106: #{tpu_custom_call.1} parent=1 // pred_check
      _
    $region107: #{tpu_custom_call.1} parent=1 // pred_check_branch
      %187 = sbr.rel (0) target = $region109
    $region108: #{tpu_custom_call.1} parent=1 // pred_region
      %188 = dma.done [#allocation10], 1024
    $region109: #{tpu_custom_call.1} parent=1 // pred_fallthru
      _
    // Predicated region
    $region110: #{tpu_custom_call.1} parent=1 // pred_check
      _
    $region111: #{tpu_custom_call.1} parent=1 // pred_check_branch
      %190 = sbr.rel (0) target = $region113
    $region112: #{tpu_custom_call.1} parent=1 // pred_region
      %191 = dma.done [#allocation13], 128
    $region113: #{tpu_custom_call.1} parent=1 // pred_fallthru
      _
    // Predicated region
    $region114: #{tpu_custom_call.1} parent=1 // pred_check
      _
    $region115: #{tpu_custom_call.1} parent=1 // pred_check_branch
      %193 = sbr.rel (0) target = $region117
    $region116: #{tpu_custom_call.1} parent=1 // pred_region
      %194 = dma.done [#allocation13], 128
    $region117: #{tpu_custom_call.1} parent=1 // pred_fallthru
      _
    // Predicated region
    $region118: #{tpu_custom_call.1} parent=1 // pred_check
      _
    $region119: #{tpu_custom_call.1} parent=1 // pred_check_branch
      %196 = sbr.rel (0) target = $region121
    $region120: #{tpu_custom_call.1} parent=1 // pred_region
      %197 = dma.done [#allocation16], 128
    $region121: #{tpu_custom_call.1} parent=1 // pred_fallthru
      _
    // Predicated region
    $region122: #{tpu_custom_call.1} parent=1 // pred_check
      _
    $region123: #{tpu_custom_call.1} parent=1 // pred_check_branch
      %199 = sbr.rel (0) target = $region125
    $region124: #{tpu_custom_call.1} parent=1 // pred_region
      %200 = dma.done [#allocation16], 16
    $region125: #{tpu_custom_call.1} parent=1 // pred_fallthru
      _
    // Predicated region
    $region126: #{tpu_custom_call.1} parent=1 // pred_check
      _
    $region127: #{tpu_custom_call.1} parent=1 // pred_check_branch
      %202 = sbr.rel (0) target = $region129
    $region128: #{tpu_custom_call.1} parent=1 // pred_region
      %203 = dma.done [#allocation19], 16
    $region129: #{tpu_custom_call.1} parent=1 // pred_fallthru
      _
    %v205 = vld [vmem:[#allocation3] sm:$0xf]
    %v206 = vld [vmem:[#allocation6] sm:$0xff]
    %v207 = vld [vmem:[#allocation8] sm:$0xff]
    %v208 = vld [vmem:[#allocation9] sm:$0xff]
    %v209 = vpack.c.bf16 %v206, %v206
    %v210 = vld [vmem:[%s8] sm:$0xf]
    %v211 = vld [vmem:[%s8 + $0x4] sm:$0xf]
    %v212 = vld [vmem:[%s8 + $0x8] sm:$0xf]
    %v213 = vld [vmem:[%s8 + $0xc] sm:$0xf]
    %v214 = vld [vmem:[%s8 + $0x10] sm:$0xf]
    %v215 = vld [vmem:[%s8 + $0x14] sm:$0xf]
    %v216 = vld [vmem:[%s8 + $0x18] sm:$0xf]
    %v217 = vld [vmem:[%s8 + $0x1c] sm:$0xf]
    %v218 = vld [vmem:[#allocation15] sm:$0xf]
    %v219 = vld [vmem:[#allocation15 + $0x4] sm:$0xf]
    %v222 = vunpack.c.l.b16 %v218
    %v223 = vunpack.c.l.b16 %v219
    %v224 = vpack.c.b16 %v223, %v222
    %vm226 = vcmask 130048
    %v228 = vsel %vm226, %v205, 0
    %230 = vmatprep.subr.bf16.mxu0 0
    %231 = vmatpush1.bf16.msra.mxu0 %v224
    %232 = vmatprep.subr.bf16.mxu0 0
    %233 = vmatpush1.bf16.msra.mxu0 0
    %234 = vmatprep.subr.bf16.mxu0 0
    %235 = vmatpush1.bf16.msra.mxu0 0
    %236 = vmatprep.subr.bf16.mxu0 0
    %237 = vmatpush1.bf16.msra.mxu0 0
    %238 = vmatprep.subr.bf16.mxu0 0
    %239 = vmatpush1.bf16.msra.mxu0 0
    %240 = vmatprep.subr.bf16.mxu0 0
    %241 = vmatpush1.bf16.msra.mxu0 0
    %242 = vmatprep.subr.bf16.mxu0 0
    %243 = vmatpush1.bf16.msra.mxu0 0
    %244 = vmatprep.subr.bf16.mxu0 0
    %245 = vmatpush1.bf16.msra.mxu0 0
    %246 = vmatprep.subr.bf16.mxu0 0
    %247 = vmatpush1.bf16.msra.mxu0 0
    %248 = vmatprep.subr.bf16.mxu0 0
    %249 = vmatpush1.bf16.msra.mxu0 0
    %250 = vmatprep.subr.bf16.mxu0 0
    %251 = vmatpush1.bf16.msra.mxu0 0
    %252 = vmatprep.subr.bf16.mxu0 0
    %253 = vmatpush1.bf16.msra.mxu0 0
    %254 = vmatprep.subr.bf16.mxu0 0
    %255 = vmatpush1.bf16.msra.mxu0 0
    %256 = vmatprep.subr.bf16.mxu0 0
    %257 = vmatpush1.bf16.msra.mxu0 0
    %258 = vmatprep.subr.bf16.mxu0 0
    %259 = vmatpush1.bf16.msra.mxu0 0
    %260 = vmatprep.subr.bf16.mxu0 0
    %261 = vmatpush1.bf16.msra.mxu0 0
    %262 = vmatprep.mubr.bf16.mxu0 0
    %263 = vmatmul.mubr.bf16.gmra.mrb[0].mxu0 %v228
    %v264 = vpop.f32.mrb[0].mxu0
    %v265 = vadd.f32 0.0, %v264
    %v266 = vpop.f32.mrb[0].mxu0
    %v267 = vpop.f32.mrb[0].mxu0
    %v268 = vpop.f32.mrb[0].mxu0
    %269 = vdwg.mxu0
    %v278 = vunpack.c.l.b16 %v210
    %v279 = vunpack.c.l.b16 %v211
    %v280 = vunpack.c.l.b16 %v212
    %v281 = vunpack.c.l.b16 %v213
    %v282 = vunpack.c.l.b16 %v214
    %v283 = vunpack.c.l.b16 %v215
    %v284 = vunpack.c.l.b16 %v216
    %v285 = vunpack.c.l.b16 %v217
    %v286 = vpack.c.b16 %v279, %v278
    %v287 = vpack.c.b16 %v281, %v280
    %v288 = vpack.c.b16 %v283, %v282
    %v289 = vpack.c.b16 %v285, %v284
    %vm294 = vcmask 523264
    %v296 = vsel %vm294, %v209, 0
    %298 = vmatprep.subr.bf16.mxu0 0
    %299 = vmatpush1.bf16.msra.mxu0 %v286
    %300 = vmatprep.subr.bf16.mxu0 0
    %301 = vmatpush1.bf16.msra.mxu0 %v287
    %302 = vmatprep.subr.bf16.mxu0 0
    %303 = vmatpush1.bf16.msra.mxu0 %v288
    %304 = vmatprep.subr.bf16.mxu0 0
    %305 = vmatpush1.bf16.msra.mxu0 %v289
    %306 = vmatprep.subr.bf16.mxu0 0
    %307 = vmatpush1.bf16.msra.mxu0 0
    %308 = vmatprep.subr.bf16.mxu0 0
    %309 = vmatpush1.bf16.msra.mxu0 0
    %310 = vmatprep.subr.bf16.mxu0 0
    %311 = vmatpush1.bf16.msra.mxu0 0
    %312 = vmatprep.subr.bf16.mxu0 0
    %313 = vmatpush1.bf16.msra.mxu0 0
    %314 = vmatprep.subr.bf16.mxu0 0
    %315 = vmatpush1.bf16.msra.mxu0 0
    %316 = vmatprep.subr.bf16.mxu0 0
    %317 = vmatpush1.bf16.msra.mxu0 0
    %318 = vmatprep.subr.bf16.mxu0 0
    %319 = vmatpush1.bf16.msra.mxu0 0
    %320 = vmatprep.subr.bf16.mxu0 0
    %321 = vmatpush1.bf16.msra.mxu0 0
    %322 = vmatprep.subr.bf16.mxu0 0
    %323 = vmatpush1.bf16.msra.mxu0 0
    %324 = vmatprep.subr.bf16.mxu0 0
    %325 = vmatpush1.bf16.msra.mxu0 0
    %326 = vmatprep.subr.bf16.mxu0 0
    %327 = vmatpush1.bf16.msra.mxu0 0
    %328 = vmatprep.subr.bf16.mxu0 0
    %329 = vmatpush1.bf16.msra.mxu0 0
    %330 = vmatprep.mubr.bf16.mxu0 0
    %331 = vmatmul.mubr.bf16.gmra.mrb[0].mxu0 %v296
    %v332 = vpop.f32.mrb[0].mxu0
    %v333 = vadd.f32 %v265, %v332
    %v334 = vpop.f32.mrb[0].mxu0
    %v335 = vpop.f32.mrb[0].mxu0
    %v336 = vpop.f32.mrb[0].mxu0
    %337 = vdwg.mxu0
    %v338 = vld [vmem:[#allocation17] sm:$0x1]
    %v340 = vlaneseq
    %v341 = vshrl.u32 %v340, 7
    %v342 = vsub.s32 0, %v341
    %v343 = vrot.slane %v338, %v342
    %v345 = vadd.f32 %v333, %v343
    %v346 = vpack.c.bf16 %v345, %v345
    %v347 = vld [vmem:[%s11] sm:$0xff]
    %v348 = vld [vmem:[%s11 + $0x8] sm:$0xff]
    %v351 = vunpack.c.l.b16 %v347
    %v352 = vunpack.c.h.b16 %v347
    %v353 = vunpack.c.l.b16 %v348
    %v354 = vunpack.c.h.b16 %v348
    %v355 = vpack.c.b16 %v353, %v351
    %v356 = vpack.c.b16 %v354, %v352
    %v360 = vsel %vm226, %v346, 0
    %362 = vmatprep.subr.bf16.mxu0 %v356
    %363 = vmatpush1.bf16.msra.mxu0 %v355
    %364 = vmatprep.subr.bf16.mxu0 0
    %365 = vmatpush1.bf16.msra.mxu0 0
    %366 = vmatprep.subr.bf16.mxu0 0
    %367 = vmatpush1.bf16.msra.mxu0 0
    %368 = vmatprep.subr.bf16.mxu0 0
    %369 = vmatpush1.bf16.msra.mxu0 0
    %370 = vmatprep.subr.bf16.mxu0 0
    %371 = vmatpush1.bf16.msra.mxu0 0
    %372 = vmatprep.subr.bf16.mxu0 0
    %373 = vmatpush1.bf16.msra.mxu0 0
    %374 = vmatprep.subr.bf16.mxu0 0
    %375 = vmatpush1.bf16.msra.mxu0 0
    %376 = vmatprep.subr.bf16.mxu0 0
    %377 = vmatpush1.bf16.msra.mxu0 0
    %378 = vmatprep.subr.bf16.mxu0 0
    %379 = vmatpush1.bf16.msra.mxu0 0
    %380 = vmatprep.subr.bf16.mxu0 0
    %381 = vmatpush1.bf16.msra.mxu0 0
    %382 = vmatprep.subr.bf16.mxu0 0
    %383 = vmatpush1.bf16.msra.mxu0 0
    %384 = vmatprep.subr.bf16.mxu0 0
    %385 = vmatpush1.bf16.msra.mxu0 0
    %386 = vmatprep.subr.bf16.mxu0 0
    %387 = vmatpush1.bf16.msra.mxu0 0
    %388 = vmatprep.subr.bf16.mxu0 0
    %389 = vmatpush1.bf16.msra.mxu0 0
    %390 = vmatprep.subr.bf16.mxu0 0
    %391 = vmatpush1.bf16.msra.mxu0 0
    %392 = vmatprep.subr.bf16.mxu0 0
    %393 = vmatpush1.bf16.msra.mxu0 0
    %394 = vmatprep.mubr.bf16.mxu0 0
    %395 = vmatmul.mubr.bf16.gmra.mrb[0].mxu0 %v360
    %v396 = vpop.f32.mrb[0].mxu0
    %v397 = vadd.f32 0.0, %v396
    %v398 = vpop.f32.mrb[0].mxu0
    %v399 = vadd.f32 0.0, %v398
    %v400 = vpop.f32.mrb[0].mxu0
    %v401 = vpop.f32.mrb[0].mxu0
    %402 = vdwg.mxu0
    %v403 = vpack.c.bf16 %v207, %v207
    %v404 = vld [vmem:[%s12] sm:$0xf]
    %v405 = vld [vmem:[%s12 + $0x4] sm:$0xf]
    %v406 = vld [vmem:[%s12 + $0x8] sm:$0xf]
    %v407 = vld [vmem:[%s12 + $0xc] sm:$0xf]
    %v412 = vunpack.c.l.b16 %v404
    %v413 = vunpack.c.l.b16 %v405
    %v414 = vunpack.c.l.b16 %v406
    %v415 = vunpack.c.l.b16 %v407
    %v416 = vpack.c.b16 %v413, %v412
    %v417 = vpack.c.b16 %v415, %v414
    %vm420 = vcmask 261120
    %v422 = vsel %vm420, %v403, 0
    %424 = vmatprep.subr.bf16.mxu0 0
    %425 = vmatpush1.bf16.msra.mxu0 %v416
    %426 = vmatprep.subr.bf16.mxu0 0
    %427 = vmatpush1.bf16.msra.mxu0 %v417
    %428 = vmatprep.subr.bf16.mxu0 0
    %429 = vmatpush1.bf16.msra.mxu0 0
    %430 = vmatprep.subr.bf16.mxu0 0
    %431 = vmatpush1.bf16.msra.mxu0 0
    %432 = vmatprep.subr.bf16.mxu0 0
    %433 = vmatpush1.bf16.msra.mxu0 0
    %434 = vmatprep.subr.bf16.mxu0 0
    %435 = vmatpush1.bf16.msra.mxu0 0
    %436 = vmatprep.subr.bf16.mxu0 0
    %437 = vmatpush1.bf16.msra.mxu0 0
    %438 = vmatprep.subr.bf16.mxu0 0
    %439 = vmatpush1.bf16.msra.mxu0 0
    %440 = vmatprep.subr.bf16.mxu0 0
    %441 = vmatpush1.bf16.msra.mxu0 0
    %442 = vmatprep.subr.bf16.mxu0 0
    %443 = vmatpush1.bf16.msra.mxu0 0
    %444 = vmatprep.subr.bf16.mxu0 0
    %445 = vmatpush1.bf16.msra.mxu0 0
    %446 = vmatprep.subr.bf16.mxu0 0
    %447 = vmatpush1.bf16.msra.mxu0 0
    %448 = vmatprep.subr.bf16.mxu0 0
    %449 = vmatpush1.bf16.msra.mxu0 0
    %450 = vmatprep.subr.bf16.mxu0 0
    %451 = vmatpush1.bf16.msra.mxu0 0
    %452 = vmatprep.subr.bf16.mxu0 0
    %453 = vmatpush1.bf16.msra.mxu0 0
    %454 = vmatprep.subr.bf16.mxu0 0
    %455 = vmatpush1.bf16.msra.mxu0 0
    %456 = vmatprep.mubr.bf16.mxu0 0
    %457 = vmatmul.mubr.bf16.gmra.mrb[0].mxu0 %v422
    %v458 = vpop.f32.mrb[0].mxu0
    %v459 = vadd.f32 0.0, %v458
    %v460 = vpop.f32.mrb[0].mxu0
    %v461 = vpop.f32.mrb[0].mxu0
    %v462 = vpop.f32.mrb[0].mxu0
    %463 = vdwg.mxu0
    %v464 = vadd.f32 %v397, %v459
    %v465 = vld [vmem:[#allocation18] sm:$0x1]
    %v467 = vlaneseq
    %v468 = vshrl.u32 %v467, 7
    %v469 = vsub.s32 0, %v468
    %v470 = vrot.slane %v465, %v469
    %v472 = vadd.f32 %v464, %v470
    %v473 = vxor.u32 %v472, 2147483648
    %v474 = vmul.f32 %v473, 1.442695
    %v475 = vpow.pop %v474
    %v476 = vadd.f32 %v475, 1.0
    %v477 = vrcp.pop %v476
    %v478 = vmul.f32 1.0, %v477
    %v479 = vtanh.pop %v472
    %481 = vrot.lane.b32.xlu0 %v208, 32
    %v482 = vpop.permute.xlu0 %481
    %v484 = vmul.f32 %v478, %v482
    %486 = vrot.lane.b32.xlu0 %v479, 64
    %v487 = vpop.permute.xlu0 %486
    %v489 = vmul.f32 %v478, %v487
    %491 = vrot.lane.b32.xlu0 %v489, 32
    %v492 = vpop.permute.xlu0 %491
    %v494 = vadd.f32 %v484, %v492
    %v495 = vtanh.pop %v494
    %497 = vrot.lane.b32.xlu0 %v495, 64
    %v498 = vpop.permute.xlu0 %497
    %v500 = vmul.f32 %v478, %v498
    %v501 = vpack.c.bf16 %v500, %v500
    %v502 = vld [vmem:[%s14] sm:$0xf]
    %v503 = vld [vmem:[%s14 + $0x4] sm:$0xf]
    %v504 = vld [vmem:[%s14 + $0x8] sm:$0xf]
    %v505 = vld [vmem:[%s14 + $0xc] sm:$0xf]
    %507 = vrot.lane.b32.xlu0 %v501, 32
    %v508 = vpop.permute.xlu0 %507
    %v513 = vunpack.c.l.b16 %v502
    %v514 = vunpack.c.l.b16 %v503
    %v515 = vunpack.c.l.b16 %v504
    %v516 = vunpack.c.l.b16 %v505
    %v517 = vpack.c.b16 %v514, %v513
    %v518 = vpack.c.b16 %v516, %v515
    %v522 = vsel %vm420, %v508, 0
    %524 = vmatprep.subr.bf16.mxu0 0
    %525 = vmatpush1.bf16.msra.mxu0 %v517
    %526 = vmatprep.subr.bf16.mxu0 0
    %527 = vmatpush1.bf16.msra.mxu0 %v518
    %528 = vmatprep.subr.bf16.mxu0 0
    %529 = vmatpush1.bf16.msra.mxu0 0
    %530 = vmatprep.subr.bf16.mxu0 0
    %531 = vmatpush1.bf16.msra.mxu0 0
    %532 = vmatprep.subr.bf16.mxu0 0
    %533 = vmatpush1.bf16.msra.mxu0 0
    %534 = vmatprep.subr.bf16.mxu0 0
    %535 = vmatpush1.bf16.msra.mxu0 0
    %536 = vmatprep.subr.bf16.mxu0 0
    %537 = vmatpush1.bf16.msra.mxu0 0
    %538 = vmatprep.subr.bf16.mxu0 0
    %539 = vmatpush1.bf16.msra.mxu0 0
    %540 = vmatprep.subr.bf16.mxu0 0
    %541 = vmatpush1.bf16.msra.mxu0 0
    %542 = vmatprep.subr.bf16.mxu0 0
    %543 = vmatpush1.bf16.msra.mxu0 0
    %544 = vmatprep.subr.bf16.mxu0 0
    %545 = vmatpush1.bf16.msra.mxu0 0
    %546 = vmatprep.subr.bf16.mxu0 0
    %547 = vmatpush1.bf16.msra.mxu0 0
    %548 = vmatprep.subr.bf16.mxu0 0
    %549 = vmatpush1.bf16.msra.mxu0 0
    %550 = vmatprep.subr.bf16.mxu0 0
    %551 = vmatpush1.bf16.msra.mxu0 0
    %552 = vmatprep.subr.bf16.mxu0 0
    %553 = vmatpush1.bf16.msra.mxu0 0
    %554 = vmatprep.subr.bf16.mxu0 0
    %555 = vmatpush1.bf16.msra.mxu0 0
    %556 = vmatprep.mubr.bf16.mxu0 0
    %557 = vmatmul.mubr.bf16.gmra.mrb[0].mxu0 %v522
    %v558 = vpop.f32.mrb[0].mxu0
    %v559 = vadd.f32 0.0, %v558
    %v560 = vpop.f32.mrb[0].mxu0
    %v561 = vpop.f32.mrb[0].mxu0
    %v562 = vpop.f32.mrb[0].mxu0
    %563 = vdwg.mxu0
    %v564 = vpack.c.bf16 %v494, %v494
    %v565 = vld [vmem:[%s15] sm:$0xf]
    %v566 = vld [vmem:[%s15 + $0x4] sm:$0xf]
    %v567 = vld [vmem:[%s15 + $0x8] sm:$0xf]
    %v568 = vld [vmem:[%s15 + $0xc] sm:$0xf]
    %570 = vrot.lane.b32.xlu0 %v564, 96
    %v571 = vpop.permute.xlu0 %570
    %v576 = vunpack.c.l.b16 %v565
    %v577 = vunpack.c.l.b16 %v566
    %v578 = vunpack.c.l.b16 %v567
    %v579 = vunpack.c.l.b16 %v568
    %v580 = vpack.c.b16 %v577, %v576
    %v581 = vpack.c.b16 %v579, %v578
    %v585 = vsel %vm420, %v571, 0
    %587 = vmatprep.subr.bf16.mxu0 0
    %588 = vmatpush1.bf16.msra.mxu0 %v580
    %589 = vmatprep.subr.bf16.mxu0 0
    %590 = vmatpush1.bf16.msra.mxu0 %v581
    %591 = vmatprep.subr.bf16.mxu0 0
    %592 = vmatpush1.bf16.msra.mxu0 0
    %593 = vmatprep.subr.bf16.mxu0 0
    %594 = vmatpush1.bf16.msra.mxu0 0
    %595 = vmatprep.subr.bf16.mxu0 0
    %596 = vmatpush1.bf16.msra.mxu0 0
    %597 = vmatprep.subr.bf16.mxu0 0
    %598 = vmatpush1.bf16.msra.mxu0 0
    %599 = vmatprep.subr.bf16.mxu0 0
    %600 = vmatpush1.bf16.msra.mxu0 0
    %601 = vmatprep.subr.bf16.mxu0 0
    %602 = vmatpush1.bf16.msra.mxu0 0
    %603 = vmatprep.subr.bf16.mxu0 0
    %604 = vmatpush1.bf16.msra.mxu0 0
    %605 = vmatprep.subr.bf16.mxu0 0
    %606 = vmatpush1.bf16.msra.mxu0 0
    %607 = vmatprep.subr.bf16.mxu0 0
    %608 = vmatpush1.bf16.msra.mxu0 0
    %609 = vmatprep.subr.bf16.mxu0 0
    %610 = vmatpush1.bf16.msra.mxu0 0
    %611 = vmatprep.subr.bf16.mxu0 0
    %612 = vmatpush1.bf16.msra.mxu0 0
    %613 = vmatprep.subr.bf16.mxu0 0
    %614 = vmatpush1.bf16.msra.mxu0 0
    %615 = vmatprep.subr.bf16.mxu0 0
    %616 = vmatpush1.bf16.msra.mxu0 0
    %617 = vmatprep.subr.bf16.mxu0 0
    %618 = vmatpush1.bf16.msra.mxu0 0
    %619 = vmatprep.mubr.bf16.mxu0 0
    %620 = vmatmul.mubr.bf16.gmra.mrb[0].mxu0 %v585
    %v621 = vpop.f32.mrb[0].mxu0
    %v622 = vadd.f32 0.0, %v621
    %v623 = vpop.f32.mrb[0].mxu0
    %v624 = vpop.f32.mrb[0].mxu0
    %v625 = vpop.f32.mrb[0].mxu0
    %626 = vdwg.mxu0
    %v627 = vadd.f32 %v559, %v622
    %v628 = vld [vmem:[%s17] sm:$0x1]
    %v630 = vlaneseq
    %v631 = vshrl.u32 %v630, 7
    %v632 = vsub.s32 0, %v631
    %v633 = vrot.slane %v628, %v632
    %v635 = vadd.f32 %v627, %v633
    %v636 = vld [vmem:[#allocation14] sm:$0xff]
    %v637 = vld [vmem:[#allocation11] sm:$0xff]
    %v638 = vld [vmem:[#allocation11 + $0x8] sm:$0xff]
    %v639 = vld [vmem:[#allocation11 + $0x10] sm:$0xff]
    %v640 = vld [vmem:[#allocation11 + $0x18] sm:$0xff]
    %v641 = vld [vmem:[#allocation11 + $0x20] sm:$0xff]
    %v642 = vld [vmem:[#allocation11 + $0x28] sm:$0xff]
    %v643 = vld [vmem:[#allocation11 + $0x30] sm:$0xff]
    %v644 = vld [vmem:[#allocation11 + $0x38] sm:$0xff]
    %v646 = vcombine.high %v635, %v635
    %v648 = vunpack.c.l.s4 1966171168
    %v649 = vunpack.c.0.s8 %v648
    %v650 = vlaneseq
    %v651 = vshrl.u32 %v650, 7
    %v652 = vsub.s32 %v649, %v651
    %v653 = vrot.slane %v635, %v652
    %v655 = vunpack.c.l.s4 1966171168
    %v656 = vunpack.c.0.s8 %v655
    %v657 = vlaneseq
    %v658 = vshrl.u32 %v657, 7
    %v659 = vsub.s32 %v656, %v658
    %v660 = vrot.slane %v646, %v659
    %v661 = vcombine.high %v653, %v653
    %v662 = vcombine.high %v660, %v660
    %v664 = vunpack.c.l.s4 1966171168
    %v665 = vunpack.c.0.s8 %v664
    %v666 = vlaneseq
    %v667 = vshrl.u32 %v666, 7
    %v668 = vsub.s32 %v665, %v667
    %v669 = vrot.slane %v653, %v668
    %v671 = vunpack.c.l.s4 1966171168
    %v672 = vunpack.c.0.s8 %v671
    %v673 = vlaneseq
    %v674 = vshrl.u32 %v673, 7
    %v675 = vsub.s32 %v672, %v674
    %v676 = vrot.slane %v660, %v675
    %v678 = vunpack.c.l.s4 1966171168
    %v679 = vunpack.c.0.s8 %v678
    %v680 = vlaneseq
    %v681 = vshrl.u32 %v680, 7
    %v682 = vsub.s32 %v679, %v681
    %v683 = vrot.slane %v661, %v682
    %v685 = vunpack.c.l.s4 1966171168
    %v686 = vunpack.c.0.s8 %v685
    %v687 = vlaneseq
    %v688 = vshrl.u32 %v687, 7
    %v689 = vsub.s32 %v686, %v688
    %v690 = vrot.slane %v662, %v689
    %v691 = vcombine.high %v669, %v669
    %v692 = vcombine.high %v676, %v676
    %v693 = vcombine.high %v683, %v683
    %v694 = vcombine.high %v690, %v690
    %v695 = vlaneseq
    %v696 = vshrl.u32 %v695, 7
    %v697 = vsub.s32 0, %v696
    %v698 = vrot.slane %v669, %v697
    %v699 = vlaneseq
    %v700 = vshrl.u32 %v699, 7
    %v701 = vsub.s32 0, %v700
    %v702 = vrot.slane %v683, %v701
    %v703 = vlaneseq
    %v704 = vshrl.u32 %v703, 7
    %v705 = vsub.s32 0, %v704
    %v706 = vrot.slane %v691, %v705
    %v707 = vlaneseq
    %v708 = vshrl.u32 %v707, 7
    %v709 = vsub.s32 0, %v708
    %v710 = vrot.slane %v693, %v709
    %v711 = vlaneseq
    %v712 = vshrl.u32 %v711, 7
    %v713 = vsub.s32 0, %v712
    %v714 = vrot.slane %v676, %v713
    %v715 = vlaneseq
    %v716 = vshrl.u32 %v715, 7
    %v717 = vsub.s32 0, %v716
    %v718 = vrot.slane %v690, %v717
    %v719 = vlaneseq
    %v720 = vshrl.u32 %v719, 7
    %v721 = vsub.s32 0, %v720
    %v722 = vrot.slane %v692, %v721
    %v723 = vlaneseq
    %v724 = vshrl.u32 %v723, 7
    %v725 = vsub.s32 0, %v724
    %v726 = vrot.slane %v694, %v725
    %v735 = vadd.f32 %v637, %v698
    %v736 = vadd.f32 %v638, %v702
    %v737 = vadd.f32 %v639, %v706
    %v738 = vadd.f32 %v640, %v710
    %v739 = vadd.f32 %v641, %v714
    %v740 = vadd.f32 %v642, %v718
    %v741 = vadd.f32 %v643, %v722
    %v742 = vadd.f32 %v644, %v726
    %v743 = vlaneseq
    %v744 = vshrl.u32 %v743, 7
    %v745 = vsub.s32 0, %v744
    %v746 = vrot.slane %v636, %v745
    %748 = vbcast.lane.b32.xlu0 %v746, 256
    %v749 = vpop.permute.xlu0 %748
    %v750 = vlaneseq
    %v751 = vshrl.u32 %v750, 7
    %v752 = vsub.s32 1, %v751
    %v753 = vrot.slane %v636, %v752
    %755 = vbcast.lane.b32.xlu0 %v753, 256
    %v756 = vpop.permute.xlu0 %755
    %v757 = vlaneseq
    %v758 = vshrl.u32 %v757, 7
    %v759 = vsub.s32 2, %v758
    %v760 = vrot.slane %v636, %v759
    %762 = vbcast.lane.b32.xlu0 %v760, 256
    %v763 = vpop.permute.xlu0 %762
    %v764 = vlaneseq
    %v765 = vshrl.u32 %v764, 7
    %v766 = vsub.s32 3, %v765
    %v767 = vrot.slane %v636, %v766
    %769 = vbcast.lane.b32.xlu0 %v767, 256
    %v770 = vpop.permute.xlu0 %769
    %v771 = vlaneseq
    %v772 = vshrl.u32 %v771, 7
    %v773 = vsub.s32 4, %v772
    %v774 = vrot.slane %v636, %v773
    %776 = vbcast.lane.b32.xlu0 %v774, 256
    %v777 = vpop.permute.xlu0 %776
    %v778 = vlaneseq
    %v779 = vshrl.u32 %v778, 7
    %v780 = vsub.s32 5, %v779
    %v781 = vrot.slane %v636, %v780
    %783 = vbcast.lane.b32.xlu0 %v781, 256
    %v784 = vpop.permute.xlu0 %783
    %v785 = vlaneseq
    %v786 = vshrl.u32 %v785, 7
    %v787 = vsub.s32 6, %v786
    %v788 = vrot.slane %v636, %v787
    %790 = vbcast.lane.b32.xlu0 %v788, 256
    %v791 = vpop.permute.xlu0 %790
    %v792 = vlaneseq
    %v793 = vshrl.u32 %v792, 7
    %v794 = vsub.s32 7, %v793
    %v795 = vrot.slane %v636, %v794
    %797 = vbcast.lane.b32.xlu0 %v795, 256
    %v798 = vpop.permute.xlu0 %797
    %v799 = vld [vmem:[%s20] sm:$0x1]
    %v801 = vlaneseq
    %v802 = vshrl.u32 %v801, 7
    %v803 = vsub.s32 0, %v802
    %v804 = vrot.slane %v799, %v803
    %v806 = vmul.f32 %v749, %v804
    %v807 = vmul.f32 %v756, %v804
    %v808 = vmul.f32 %v763, %v804
    %v809 = vmul.f32 %v770, %v804
    %v810 = vmul.f32 %v777, %v804
    %v811 = vmul.f32 %v784, %v804
    %v812 = vmul.f32 %v791, %v804
    %v813 = vmul.f32 %v798, %v804
    %v814 = vadd.f32 %v735, %v806
    %v815 = vadd.f32 %v736, %v807
    %v816 = vadd.f32 %v737, %v808
    %v817 = vadd.f32 %v738, %v809
    %v818 = vadd.f32 %v739, %v810
    %v819 = vadd.f32 %v740, %v811
    %v820 = vadd.f32 %v741, %v812
    %v821 = vadd.f32 %v742, %v813
    %v822 = vtanh.pop %v814
    %v823 = vtanh.pop %v815
    %v824 = vtanh.pop %v816
    %v825 = vtanh.pop %v817
    %v826 = vtanh.pop %v818
    %v827 = vtanh.pop %v819
    %v828 = vtanh.pop %v820
    %v829 = vtanh.pop %v821
    %v830 = vld [vmem:[%s21] sm:$0x1]
    %v832 = vlaneseq
    %v833 = vshrl.u32 %v832, 7
    %v834 = vsub.s32 0, %v833
    %v835 = vrot.slane %v830, %v834
    %v837 = vmul.f32 %v822, %v835
    %v838 = vmul.f32 %v823, %v835
    %v839 = vmul.f32 %v824, %v835
    %v840 = vmul.f32 %v825, %v835
    %v841 = vmul.f32 %v826, %v835
    %v842 = vmul.f32 %v827, %v835
    %v843 = vmul.f32 %v828, %v835
    %v844 = vmul.f32 %v829, %v835
    %v845 = vsel %vm294, %v837, 0.0
    %846 = vadd.xlane.f32.xlu0 %v845
    %v847 = vpop.xlane.xlu0 %846
    %v848 = vsel %vm294, %v838, 0.0
    %849 = vadd.xlane.f32.xlu0 %v848
    %v850 = vpop.xlane.xlu0 %849
    %v851 = vsel %vm294, %v839, 0.0
    %852 = vadd.xlane.f32.xlu0 %v851
    %v853 = vpop.xlane.xlu0 %852
    %v854 = vsel %vm294, %v840, 0.0
    %855 = vadd.xlane.f32.xlu0 %v854
    %v856 = vpop.xlane.xlu0 %855
    %v857 = vsel %vm294, %v841, 0.0
    %858 = vadd.xlane.f32.xlu0 %v857
    %v859 = vpop.xlane.xlu0 %858
    %v860 = vsel %vm294, %v842, 0.0
    %861 = vadd.xlane.f32.xlu0 %v860
    %v862 = vpop.xlane.xlu0 %861
    %v863 = vsel %vm294, %v843, 0.0
    %864 = vadd.xlane.f32.xlu0 %v863
    %v865 = vpop.xlane.xlu0 %864
    %v866 = vsel %vm294, %v844, 0.0
    %867 = vadd.xlane.f32.xlu0 %v866
    %v868 = vpop.xlane.xlu0 %867
    %v869 = vld [vmem:[#allocation12] sm:$0xff]
    %v878 = vlaneseq
    %v879 = vand.u32 %v878, 127
    %v880 = vlaneseq
    %v881 = vshrl.u32 %v880, 7
    %v882 = vsub.s32 %v879, %v881
    %v883 = vrot.slane %v847, %v882
    %v884 = vlaneseq
    %v885 = vshrl.u32 %v884, 7
    %v886 = vsub.s32 %v879, %v885
    %v887 = vrot.slane %v850, %v886
    %v888 = vlaneseq
    %v889 = vshrl.u32 %v888, 7
    %v890 = vsub.s32 %v879, %v889
    %v891 = vrot.slane %v853, %v890
    %v892 = vlaneseq
    %v893 = vshrl.u32 %v892, 7
    %v894 = vsub.s32 %v879, %v893
    %v895 = vrot.slane %v856, %v894
    %v896 = vlaneseq
    %v897 = vshrl.u32 %v896, 7
    %v898 = vsub.s32 %v879, %v897
    %v899 = vrot.slane %v859, %v898
    %v900 = vlaneseq
    %v901 = vshrl.u32 %v900, 7
    %v902 = vsub.s32 %v879, %v901
    %v903 = vrot.slane %v862, %v902
    %v904 = vlaneseq
    %v905 = vshrl.u32 %v904, 7
    %v906 = vsub.s32 %v879, %v905
    %v907 = vrot.slane %v865, %v906
    %v908 = vlaneseq
    %v909 = vshrl.u32 %v908, 7
    %v910 = vsub.s32 %v879, %v909
    %v911 = vrot.slane %v868, %v910
    %vm912 = vcmask 1041409
    %v913 = vsel %vm912, %v887, %v883
    %vm914 = vcmask 1042434
    %v915 = vsel %vm914, %v891, %v913
    %vm916 = vcmask 1043459
    %v917 = vsel %vm916, %v895, %v915
    %vm918 = vcmask 1044484
    %v919 = vsel %vm918, %v899, %v917
    %vm920 = vcmask 1045509
    %v921 = vsel %vm920, %v903, %v919
    %vm922 = vcmask 1046534
    %v923 = vsel %vm922, %v907, %v921
    %vm924 = vcmask 1047559
    %v925 = vsel %vm924, %v911, %v923
    %vm927 = vcmask 64512
    %v928 = vsel %vm927, %v925, -inf
    %929 = vmax.xlane.f32.xlu0 %v928
    %v930 = vpop.xlane.xlu0 %929
    %v932 = vlaneseq
    %v933 = vshrl.u32 %v932, 7
    %v934 = vsub.s32 0, %v933
    %v935 = vrot.slane %v930, %v934
    %v936 = vlaneseq
    %v937 = vshrl.u32 %v936, 7
    %v938 = vsub.s32 1, %v937
    %v939 = vrot.slane %v930, %v938
    %v940 = vlaneseq
    %v941 = vshrl.u32 %v940, 7
    %v942 = vsub.s32 2, %v941
    %v943 = vrot.slane %v930, %v942
    %v944 = vlaneseq
    %v945 = vshrl.u32 %v944, 7
    %v946 = vsub.s32 3, %v945
    %v947 = vrot.slane %v930, %v946
    %v948 = vlaneseq
    %v949 = vshrl.u32 %v948, 7
    %v950 = vsub.s32 4, %v949
    %v951 = vrot.slane %v930, %v950
    %v952 = vlaneseq
    %v953 = vshrl.u32 %v952, 7
    %v954 = vsub.s32 5, %v953
    %v955 = vrot.slane %v930, %v954
    %v956 = vlaneseq
    %v957 = vshrl.u32 %v956, 7
    %v958 = vsub.s32 6, %v957
    %v959 = vrot.slane %v930, %v958
    %v960 = vlaneseq
    %v961 = vshrl.u32 %v960, 7
    %v962 = vsub.s32 7, %v961
    %v963 = vrot.slane %v930, %v962
    %v972 = vsub.f32 %v847, %v935
    %v973 = vsub.f32 %v850, %v939
    %v974 = vsub.f32 %v853, %v943
    %v975 = vsub.f32 %v856, %v947
    %v976 = vsub.f32 %v859, %v951
    %v977 = vsub.f32 %v862, %v955
    %v978 = vsub.f32 %v865, %v959
    %v979 = vsub.f32 %v868, %v963
    %v980 = vmul.f32 %v972, 1.442695
    %v981 = vpow.pop %v980
    %v982 = vmul.f32 %v973, 1.442695
    %v983 = vpow.pop %v982
    %v984 = vmul.f32 %v974, 1.442695
    %v985 = vpow.pop %v984
    %v986 = vmul.f32 %v975, 1.442695
    %v987 = vpow.pop %v986
    %v988 = vmul.f32 %v976, 1.442695
    %v989 = vpow.pop %v988
    %v990 = vmul.f32 %v977, 1.442695
    %v991 = vpow.pop %v990
    %v992 = vmul.f32 %v978, 1.442695
    %v993 = vpow.pop %v992
    %v994 = vmul.f32 %v979, 1.442695
    %v995 = vpow.pop %v994
    %v997 = vlaneseq
    %v998 = vshrl.u32 %v997, 7
    %v999 = vsub.s32 0, %v998
    %v1000 = vrot.slane %v869, %v999
    %1002 = vbcast.lane.b32.xlu0 %v1000, 256
    %v1003 = vpop.permute.xlu0 %1002
    %v1004 = vlaneseq
    %v1005 = vshrl.u32 %v1004, 7
    %v1006 = vsub.s32 1, %v1005
    %v1007 = vrot.slane %v869, %v1006
    %1009 = vbcast.lane.b32.xlu0 %v1007, 256
    %v1010 = vpop.permute.xlu0 %1009
    %v1011 = vlaneseq
    %v1012 = vshrl.u32 %v1011, 7
    %v1013 = vsub.s32 2, %v1012
    %v1014 = vrot.slane %v869, %v1013
    %1016 = vbcast.lane.b32.xlu0 %v1014, 256
    %v1017 = vpop.permute.xlu0 %1016
    %v1018 = vlaneseq
    %v1019 = vshrl.u32 %v1018, 7
    %v1020 = vsub.s32 3, %v1019
    %v1021 = vrot.slane %v869, %v1020
    %1023 = vbcast.lane.b32.xlu0 %v1021, 256
    %v1024 = vpop.permute.xlu0 %1023
    %v1025 = vlaneseq
    %v1026 = vshrl.u32 %v1025, 7
    %v1027 = vsub.s32 4, %v1026
    %v1028 = vrot.slane %v869, %v1027
    %1030 = vbcast.lane.b32.xlu0 %v1028, 256
    %v1031 = vpop.permute.xlu0 %1030
    %v1032 = vlaneseq
    %v1033 = vshrl.u32 %v1032, 7
    %v1034 = vsub.s32 5, %v1033
    %v1035 = vrot.slane %v869, %v1034
    %1037 = vbcast.lane.b32.xlu0 %v1035, 256
    %v1038 = vpop.permute.xlu0 %1037
    %v1039 = vlaneseq
    %v1040 = vshrl.u32 %v1039, 7
    %v1041 = vsub.s32 6, %v1040
    %v1042 = vrot.slane %v869, %v1041
    %1044 = vbcast.lane.b32.xlu0 %v1042, 256
    %v1045 = vpop.permute.xlu0 %1044
    %v1046 = vlaneseq
    %v1047 = vshrl.u32 %v1046, 7
    %v1048 = vsub.s32 7, %v1047
    %v1049 = vrot.slane %v869, %v1048
    %1051 = vbcast.lane.b32.xlu0 %v1049, 256
    %v1052 = vpop.permute.xlu0 %1051
    %v1061 = vmul.f32 %v981, %v1003
    %v1062 = vmul.f32 %v983, %v1010
    %v1063 = vmul.f32 %v985, %v1017
    %v1064 = vmul.f32 %v987, %v1024
    %v1065 = vmul.f32 %v989, %v1031
    %v1066 = vmul.f32 %v991, %v1038
    %v1067 = vmul.f32 %v993, %v1045
    %v1068 = vmul.f32 %v995, %v1052
    %1077 = vset.pattern.permute.xlu0 0
    %1078 = vperm.xlu0 %1077, %v1061
    %v1079 = vpop.permute.xlu0 %1078
    %1080 = vset.pattern.permute.xlu0 0
    %1081 = vperm.xlu0 %1080, %v1062
    %v1082 = vpop.permute.xlu0 %1081
    %1083 = vset.pattern.permute.xlu0 0
    %1084 = vperm.xlu0 %1083, %v1063
    %v1085 = vpop.permute.xlu0 %1084
    %1086 = vset.pattern.permute.xlu0 0
    %1087 = vperm.xlu0 %1086, %v1064
    %v1088 = vpop.permute.xlu0 %1087
    %1089 = vset.pattern.permute.xlu0 0
    %1090 = vperm.xlu0 %1089, %v1065
    %v1091 = vpop.permute.xlu0 %1090
    %1092 = vset.pattern.permute.xlu0 0
    %1093 = vperm.xlu0 %1092, %v1066
    %v1094 = vpop.permute.xlu0 %1093
    %1095 = vset.pattern.permute.xlu0 0
    %1096 = vperm.xlu0 %1095, %v1067
    %v1097 = vpop.permute.xlu0 %1096
    %1098 = vset.pattern.permute.xlu0 0
    %1099 = vperm.xlu0 %1098, %v1068
    %v1100 = vpop.permute.xlu0 %1099
    %v1101 = vlaneseq
    %v1102 = vshrl.u32 %v1101, 7
    %v1103 = vsub.s32 %v879, %v1102
    %v1104 = vrot.slane %v1079, %v1103
    %v1105 = vlaneseq
    %v1106 = vshrl.u32 %v1105, 7
    %v1107 = vsub.s32 %v879, %v1106
    %v1108 = vrot.slane %v1082, %v1107
    %v1109 = vlaneseq
    %v1110 = vshrl.u32 %v1109, 7
    %v1111 = vsub.s32 %v879, %v1110
    %v1112 = vrot.slane %v1085, %v1111
    %v1113 = vlaneseq
    %v1114 = vshrl.u32 %v1113, 7
    %v1115 = vsub.s32 %v879, %v1114
    %v1116 = vrot.slane %v1088, %v1115
    %v1117 = vlaneseq
    %v1118 = vshrl.u32 %v1117, 7
    %v1119 = vsub.s32 %v879, %v1118
    %v1120 = vrot.slane %v1091, %v1119
    %v1121 = vlaneseq
    %v1122 = vshrl.u32 %v1121, 7
    %v1123 = vsub.s32 %v879, %v1122
    %v1124 = vrot.slane %v1094, %v1123
    %v1125 = vlaneseq
    %v1126 = vshrl.u32 %v1125, 7
    %v1127 = vsub.s32 %v879, %v1126
    %v1128 = vrot.slane %v1097, %v1127
    %v1129 = vlaneseq
    %v1130 = vshrl.u32 %v1129, 7
    %v1131 = vsub.s32 %v879, %v1130
    %v1132 = vrot.slane %v1100, %v1131
    %v1133 = vsel %vm912, %v1108, %v1104
    %v1134 = vsel %vm914, %v1112, %v1133
    %v1135 = vsel %vm916, %v1116, %v1134
    %v1136 = vsel %vm918, %v1120, %v1135
    %v1137 = vsel %vm920, %v1124, %v1136
    %v1138 = vsel %vm922, %v1128, %v1137
    %v1139 = vsel %vm924, %v1132, %v1138
    %v1141 = vsel %vm927, %v1139, 0.0
    %1142 = vadd.xlane.f32.xlu0 %v1141
    %v1143 = vpop.xlane.xlu0 %1142
    %v1144 = vrcp.pop %v1143
    %v1146 = vlaneseq
    %v1147 = vshrl.u32 %v1146, 7
    %v1148 = vsub.s32 0, %v1147
    %v1149 = vrot.slane %v1144, %v1148
    %v1150 = vlaneseq
    %v1151 = vshrl.u32 %v1150, 7
    %v1152 = vsub.s32 1, %v1151
    %v1153 = vrot.slane %v1144, %v1152
    %v1154 = vlaneseq
    %v1155 = vshrl.u32 %v1154, 7
    %v1156 = vsub.s32 2, %v1155
    %v1157 = vrot.slane %v1144, %v1156
    %v1158 = vlaneseq
    %v1159 = vshrl.u32 %v1158, 7
    %v1160 = vsub.s32 3, %v1159
    %v1161 = vrot.slane %v1144, %v1160
    %v1162 = vlaneseq
    %v1163 = vshrl.u32 %v1162, 7
    %v1164 = vsub.s32 4, %v1163
    %v1165 = vrot.slane %v1144, %v1164
    %v1166 = vlaneseq
    %v1167 = vshrl.u32 %v1166, 7
    %v1168 = vsub.s32 5, %v1167
    %v1169 = vrot.slane %v1144, %v1168
    %v1170 = vlaneseq
    %v1171 = vshrl.u32 %v1170, 7
    %v1172 = vsub.s32 6, %v1171
    %v1173 = vrot.slane %v1144, %v1172
    %v1174 = vlaneseq
    %v1175 = vshrl.u32 %v1174, 7
    %v1176 = vsub.s32 7, %v1175
    %v1177 = vrot.slane %v1144, %v1176
    %v1186 = vmul.f32 %v1061, %v1149
    %v1187 = vmul.f32 %v1062, %v1153
    %v1188 = vmul.f32 %v1063, %v1157
    %v1189 = vmul.f32 %v1064, %v1161
    %v1190 = vmul.f32 %v1065, %v1165
    %v1191 = vmul.f32 %v1066, %v1169
    %v1192 = vmul.f32 %v1067, %v1173
    %v1193 = vmul.f32 %v1068, %v1177
    %v1194 = vld [vmem:[%s4] sm:$0xff]
    %v1195 = vld [vmem:[%s4 + $0x8] sm:$0xff]
    %v1196 = vld [vmem:[%s4 + $0x10] sm:$0xff]
    %v1197 = vld [vmem:[%s4 + $0x18] sm:$0xff]
    %v1198 = vld [vmem:[%s4 + $0x20] sm:$0xff]
    %v1199 = vld [vmem:[%s4 + $0x28] sm:$0xff]
    %v1200 = vld [vmem:[%s4 + $0x30] sm:$0xff]
    %v1201 = vld [vmem:[%s4 + $0x38] sm:$0xff]
    %1203 = vset.pattern.permute.xlu0 0
    %1204 = vperm.xlu0 %1203, %v1186
    %v1205 = vpop.permute.xlu0 %1204
    %1208 = vset.pattern.permute.xlu0 0
    %1209 = vperm.xlu0 %1208, %v1187
    %v1210 = vpop.permute.xlu0 %1209
    %1213 = vset.pattern.permute.xlu0 0
    %1214 = vperm.xlu0 %1213, %v1188
    %v1215 = vpop.permute.xlu0 %1214
    %1218 = vset.pattern.permute.xlu0 0
    %1219 = vperm.xlu0 %1218, %v1189
    %v1220 = vpop.permute.xlu0 %1219
    %1223 = vset.pattern.permute.xlu0 0
    %1224 = vperm.xlu0 %1223, %v1190
    %v1225 = vpop.permute.xlu0 %1224
    %1228 = vset.pattern.permute.xlu0 0
    %1229 = vperm.xlu0 %1228, %v1191
    %v1230 = vpop.permute.xlu0 %1229
    %1233 = vset.pattern.permute.xlu0 0
    %1234 = vperm.xlu0 %1233, %v1192
    %v1235 = vpop.permute.xlu0 %1234
    %1238 = vset.pattern.permute.xlu0 0
    %1239 = vperm.xlu0 %1238, %v1193
    %v1240 = vpop.permute.xlu0 %1239
    %v1242 = vmul.f32 %v1205, %v1194
    %v1243 = vmul.f32 %v1210, %v1195
    %v1244 = vmul.f32 %v1215, %v1196
    %v1245 = vmul.f32 %v1220, %v1197
    %v1246 = vmul.f32 %v1225, %v1198
    %v1247 = vmul.f32 %v1230, %v1199
    %v1248 = vmul.f32 %v1235, %v1200
    %v1249 = vmul.f32 %v1240, %v1201
    %v1250 = vsel %vm294, %v1242, 0.0
    %v1251 = vrot.slane %v1250, 4
    %v1252 = vadd.f32 %v1250, %v1251
    %v1253 = vrot.slane %v1252, 2
    %v1254 = vadd.f32 %v1252, %v1253
    %v1255 = vrot.slane %v1254, 1
    %v1256 = vadd.f32 %v1254, %v1255
    %v1257 = vsel %vm294, %v1243, 0.0
    %v1258 = vrot.slane %v1257, 4
    %v1259 = vadd.f32 %v1257, %v1258
    %v1260 = vrot.slane %v1259, 2
    %v1261 = vadd.f32 %v1259, %v1260
    %v1262 = vrot.slane %v1261, 1
    %v1263 = vadd.f32 %v1261, %v1262
    %v1264 = vsel %vm294, %v1244, 0.0
    %v1265 = vrot.slane %v1264, 4
    %v1266 = vadd.f32 %v1264, %v1265
    %v1267 = vrot.slane %v1266, 2
    %v1268 = vadd.f32 %v1266, %v1267
    %v1269 = vrot.slane %v1268, 1
    %v1270 = vadd.f32 %v1268, %v1269
    %v1271 = vsel %vm294, %v1245, 0.0
    %v1272 = vrot.slane %v1271, 4
    %v1273 = vadd.f32 %v1271, %v1272
    %v1274 = vrot.slane %v1273, 2
    %v1275 = vadd.f32 %v1273, %v1274
    %v1276 = vrot.slane %v1275, 1
    %v1277 = vadd.f32 %v1275, %v1276
    %v1278 = vsel %vm294, %v1246, 0.0
    %v1279 = vrot.slane %v1278, 4
    %v1280 = vadd.f32 %v1278, %v1279
    %v1281 = vrot.slane %v1280, 2
    %v1282 = vadd.f32 %v1280, %v1281
    %v1283 = vrot.slane %v1282, 1
    %v1284 = vadd.f32 %v1282, %v1283
    %v1285 = vsel %vm294, %v1247, 0.0
    %v1286 = vrot.slane %v1285, 4
    %v1287 = vadd.f32 %v1285, %v1286
    %v1288 = vrot.slane %v1287, 2
    %v1289 = vadd.f32 %v1287, %v1288
    %v1290 = vrot.slane %v1289, 1
    %v1291 = vadd.f32 %v1289, %v1290
    %v1292 = vsel %vm294, %v1248, 0.0
    %v1293 = vrot.slane %v1292, 4
    %v1294 = vadd.f32 %v1292, %v1293
    %v1295 = vrot.slane %v1294, 2
    %v1296 = vadd.f32 %v1294, %v1295
    %v1297 = vrot.slane %v1296, 1
    %v1298 = vadd.f32 %v1296, %v1297
    %v1299 = vsel %vm294, %v1249, 0.0
    %v1300 = vrot.slane %v1299, 4
    %v1301 = vadd.f32 %v1299, %v1300
    %v1302 = vrot.slane %v1301, 2
    %v1303 = vadd.f32 %v1301, %v1302
    %v1304 = vrot.slane %v1303, 1
    %v1305 = vadd.f32 %v1303, %v1304
    %v1306 = vpack.c.bf16 %v1256, %v1256
    %v1307 = vpack.c.bf16 %v1263, %v1263
    %v1308 = vpack.c.bf16 %v1270, %v1270
    %v1309 = vpack.c.bf16 %v1277, %v1277
    %v1310 = vpack.c.bf16 %v1284, %v1284
    %v1311 = vpack.c.bf16 %v1291, %v1291
    %v1312 = vpack.c.bf16 %v1298, %v1298
    %v1313 = vpack.c.bf16 %v1305, %v1305
    %v1314 = vld [vmem:[%s16] sm:$0xf]
    %v1315 = vld [vmem:[%s16 + $0x4] sm:$0xf]
    %v1316 = vld [vmem:[%s16 + $0x8] sm:$0xf]
    %v1317 = vld [vmem:[%s16 + $0xc] sm:$0xf]
    %v1318 = vld [vmem:[%s16 + $0x10] sm:$0xf]
    %v1319 = vld [vmem:[%s16 + $0x14] sm:$0xf]
    %v1320 = vld [vmem:[%s16 + $0x18] sm:$0xf]
    %v1321 = vld [vmem:[%s16 + $0x1c] sm:$0xf]
    %v1330 = vunpack.c.l.b16 %v1306
    %v1331 = vunpack.c.l.b16 %v1307
    %v1332 = vunpack.c.l.b16 %v1308
    %v1333 = vunpack.c.l.b16 %v1309
    %v1334 = vunpack.c.l.b16 %v1310
    %v1335 = vunpack.c.l.b16 %v1311
    %v1336 = vunpack.c.l.b16 %v1312
    %v1337 = vunpack.c.l.b16 %v1313
    %v1338 = vsel %vm912, %v1331, %v1330
    %v1339 = vsel %vm914, %v1332, %v1338
    %v1340 = vsel %vm916, %v1333, %v1339
    %v1341 = vsel %vm918, %v1334, %v1340
    %v1342 = vsel %vm920, %v1335, %v1341
    %v1343 = vsel %vm922, %v1336, %v1342
    %v1344 = vsel %vm924, %v1337, %v1343
    %v1345 = vpack.c.b16 %v1344, %v1344
    %v1354 = vunpack.c.l.b16 %v1314
    %v1355 = vunpack.c.l.b16 %v1315
    %v1356 = vunpack.c.l.b16 %v1316
    %v1357 = vunpack.c.l.b16 %v1317
    %v1358 = vunpack.c.l.b16 %v1318
    %v1359 = vunpack.c.l.b16 %v1319
    %v1360 = vunpack.c.l.b16 %v1320
    %v1361 = vunpack.c.l.b16 %v1321
    %v1362 = vpack.c.b16 %v1355, %v1354
    %v1363 = vpack.c.b16 %v1357, %v1356
    %v1364 = vpack.c.b16 %v1359, %v1358
    %v1365 = vpack.c.b16 %v1361, %v1360
    %v1371 = vsel %vm294, %v1345, 0
    %1373 = vmatprep.subr.bf16.mxu0 0
    %1374 = vmatpush1.bf16.msra.mxu0 %v1362
    %1375 = vmatprep.subr.bf16.mxu0 0
    %1376 = vmatpush1.bf16.msra.mxu0 %v1363
    %1377 = vmatprep.subr.bf16.mxu0 0
    %1378 = vmatpush1.bf16.msra.mxu0 %v1364
    %1379 = vmatprep.subr.bf16.mxu0 0
    %1380 = vmatpush1.bf16.msra.mxu0 %v1365
    %1381 = vmatprep.subr.bf16.mxu0 0
    %1382 = vmatpush1.bf16.msra.mxu0 0
    %1383 = vmatprep.subr.bf16.mxu0 0
    %1384 = vmatpush1.bf16.msra.mxu0 0
    %1385 = vmatprep.subr.bf16.mxu0 0
    %1386 = vmatpush1.bf16.msra.mxu0 0
    %1387 = vmatprep.subr.bf16.mxu0 0
    %1388 = vmatpush1.bf16.msra.mxu0 0
    %1389 = vmatprep.subr.bf16.mxu0 0
    %1390 = vmatpush1.bf16.msra.mxu0 0
    %1391 = vmatprep.subr.bf16.mxu0 0
    %1392 = vmatpush1.bf16.msra.mxu0 0
    %1393 = vmatprep.subr.bf16.mxu0 0
    %1394 = vmatpush1.bf16.msra.mxu0 0
    %1395 = vmatprep.subr.bf16.mxu0 0
    %1396 = vmatpush1.bf16.msra.mxu0 0
    %1397 = vmatprep.subr.bf16.mxu0 0
    %1398 = vmatpush1.bf16.msra.mxu0 0
    %1399 = vmatprep.subr.bf16.mxu0 0
    %1400 = vmatpush1.bf16.msra.mxu0 0
    %1401 = vmatprep.subr.bf16.mxu0 0
    %1402 = vmatpush1.bf16.msra.mxu0 0
    %1403 = vmatprep.subr.bf16.mxu0 0
    %1404 = vmatpush1.bf16.msra.mxu0 0
    %1405 = vmatprep.mubr.bf16.mxu0 0
    %1406 = vmatmul.mubr.bf16.gmra.mrb[0].mxu0 %v1371
    %v1407 = vpop.f32.mrb[0].mxu0
    %v1408 = vadd.f32 0.0, %v1407
    %v1409 = vpop.f32.mrb[0].mxu0
    %v1410 = vpop.f32.mrb[0].mxu0
    %v1411 = vpop.f32.mrb[0].mxu0
    %1412 = vdwg.mxu0
    %1414 = vrot.lane.b32.xlu0 %v559, 32
    %v1415 = vpop.permute.xlu0 %1414
    %v1417 = vadd.f32 %v399, %v1415
    %1419 = vrot.lane.b32.xlu0 %v622, 64
    %v1420 = vpop.permute.xlu0 %1419
    %v1422 = vadd.f32 %v1417, %v1420
    %1424 = vrot.lane.b32.xlu0 %v1408, 96
    %v1425 = vpop.permute.xlu0 %1424
    %v1427 = vadd.f32 %v1422, %v1425
    %v1428 = vld [vmem:[#allocation2] sm:$0x1]
    %v1430 = vlaneseq
    %v1431 = vshrl.u32 %v1430, 7
    %v1432 = vsub.s32 0, %v1431
    %v1433 = vrot.slane %v1428, %v1432
    %v1435 = vadd.f32 %v1427, %v1433
    %v1436 = vxor.u32 %v1435, 2147483648
    %v1437 = vmul.f32 %v1436, 1.442695
    %v1438 = vpow.pop %v1437
    %v1439 = vadd.f32 %v1438, 1.0
    %v1440 = vrcp.pop %v1439
    %v1441 = vmul.f32 1.0, %v1440
    %1442 = vrot.lane.b32.xlu0 %v1408, 64
    %v1443 = vpop.permute.xlu0 %1442
    %v1445 = vadd.f32 %v559, %v1443
    %v1446 = vld [vmem:[%s18] sm:$0x1]
    %v1448 = vlaneseq
    %v1449 = vshrl.u32 %v1448, 7
    %v1450 = vsub.s32 0, %v1449
    %v1451 = vrot.slane %v1446, %v1450
    %1452 = vrot.lane.b32.xlu0 %v1451, 64
    %v1453 = vpop.permute.xlu0 %1452
    %v1455 = vadd.f32 %v1445, %v1453
    %1457 = vrot.lane.b32.xlu0 %v500, 32
    %v1458 = vpop.permute.xlu0 %1457
    %1460 = vst.msk [vmem:[#allocation20] sm:$0xff] %vm420, %v1458
    %1462 = vrot.lane.b32.xlu0 %v494, 96
    %v1463 = vpop.permute.xlu0 %1462
    %1465 = vst.msk [vmem:[#allocation21] sm:$0xff] %vm420, %v1463
    %v1474 = vsel %vm912, %v1263, %v1256
    %v1475 = vsel %vm914, %v1270, %v1474
    %v1476 = vsel %vm916, %v1277, %v1475
    %v1477 = vsel %vm918, %v1284, %v1476
    %v1478 = vsel %vm920, %v1291, %v1477
    %v1479 = vsel %vm922, %v1298, %v1478
    %v1480 = vsel %vm924, %v1305, %v1479
    %1482 = vst.msk [vmem:[#allocation23] sm:$0xff] %vm294, %v1480
    %v1483 = vlaneseq
    %v1484 = vshrl.u32 %v1483, 7
    %v1485 = vsub.s32 %v879, %v1484
    %v1486 = vrot.slane %v1205, %v1485
    %v1487 = vlaneseq
    %v1488 = vshrl.u32 %v1487, 7
    %v1489 = vsub.s32 %v879, %v1488
    %v1490 = vrot.slane %v1210, %v1489
    %v1491 = vlaneseq
    %v1492 = vshrl.u32 %v1491, 7
    %v1493 = vsub.s32 %v879, %v1492
    %v1494 = vrot.slane %v1215, %v1493
    %v1495 = vlaneseq
    %v1496 = vshrl.u32 %v1495, 7
    %v1497 = vsub.s32 %v879, %v1496
    %v1498 = vrot.slane %v1220, %v1497
    %v1499 = vlaneseq
    %v1500 = vshrl.u32 %v1499, 7
    %v1501 = vsub.s32 %v879, %v1500
    %v1502 = vrot.slane %v1225, %v1501
    %v1503 = vlaneseq
    %v1504 = vshrl.u32 %v1503, 7
    %v1505 = vsub.s32 %v879, %v1504
    %v1506 = vrot.slane %v1230, %v1505
    %v1507 = vlaneseq
    %v1508 = vshrl.u32 %v1507, 7
    %v1509 = vsub.s32 %v879, %v1508
    %v1510 = vrot.slane %v1235, %v1509
    %v1511 = vlaneseq
    %v1512 = vshrl.u32 %v1511, 7
    %v1513 = vsub.s32 %v879, %v1512
    %v1514 = vrot.slane %v1240, %v1513
    %v1515 = vsel %vm912, %v1490, %v1486
    %v1516 = vsel %vm914, %v1494, %v1515
    %v1517 = vsel %vm916, %v1498, %v1516
    %v1518 = vsel %vm918, %v1502, %v1517
    %v1519 = vsel %vm920, %v1506, %v1518
    %v1520 = vsel %vm922, %v1510, %v1519
    %v1521 = vsel %vm924, %v1514, %v1520
    %1523 = vst.msk [vmem:[#allocation24] sm:$0xff] %vm927, %v1521
    %v1524 = vadd.f32 %v636, %v1521
    %1525 = vst.msk [vmem:[#allocation26] sm:$0xff] %vm927, %v1524
    %vm1526 = vcmask 7168
    %1527 = vst.msk [vmem:[%s27] sm:$0xff] %vm1526, %v1441
    %v1528 = vpack.c.bf16 %v1455, %v1455
    %v1530 = vunpack.c.l.b16 %v1528
    %v1531 = vpack.c.b16 %v1530, %v1530
    %1532 = vrot.lane.b32.xlu0 %v1531, 64
    %v1533 = vpop.permute.xlu0 %1532
    %vm1535 = vcmask 257024
    %1536 = vst.msk [vmem:[#allocation27] sm:$0xf] %vm1535, %v1533
    // Predicated region
    $region130: #{tpu_custom_call.1} parent=1 // pred_check
      _
    $region131: #{tpu_custom_call.1} parent=1 // pred_check_branch
      %1538 = sbr.rel (0) target = $region133
    $region132: #{tpu_custom_call.1} parent=1 // pred_region
      %s1540 = ssub.s32 128, 128
      %1541 = vsyncadd [#allocation5], %s1540
      %s1543 = sshll.u32 [#allocation20], 4
      %s1544 = int_to_ptr.vmem [resolvable:$true] %s1543
      %1546 = dma.vmem_to_hbm [thread:$0]  %s1544, 128, %s22, [#allocation5]
    $region133: #{tpu_custom_call.1} parent=1 // pred_fallthru
      _
    // Predicated region
    $region134: #{tpu_custom_call.1} parent=1 // pred_check
      _
    $region135: #{tpu_custom_call.1} parent=1 // pred_check_branch
      %1548 = sbr.rel (0) target = $region137
    $region136: #{tpu_custom_call.1} parent=1 // pred_region
      %s1550 = ssub.s32 128, 128
      %1551 = vsyncadd [#allocation22], %s1550
      %s1553 = sshll.u32 [#allocation21], 4
      %s1554 = int_to_ptr.vmem [resolvable:$true] %s1553
      %1556 = dma.vmem_to_hbm [thread:$0]  %s1554, 128, %s23, [#allocation22]
    $region137: #{tpu_custom_call.1} parent=1 // pred_fallthru
      _
    // Predicated region
    $region138: #{tpu_custom_call.1} parent=1 // pred_check
      _
    $region139: #{tpu_custom_call.1} parent=1 // pred_check_branch
      %1558 = sbr.rel (0) target = $region141
    $region140: #{tpu_custom_call.1} parent=1 // pred_region
      %s1560 = ssub.s32 128, 128
      %1561 = vsyncadd [#allocation22], %s1560
      %s1563 = sshll.u32 [#allocation23], 4
      %s1564 = int_to_ptr.vmem [resolvable:$true] %s1563
      %1566 = dma.vmem_to_hbm [thread:$0]  %s1564, 128, %s24, [#allocation22]
    $region141: #{tpu_custom_call.1} parent=1 // pred_fallthru
      _
    // Predicated region
    $region142: #{tpu_custom_call.1} parent=1 // pred_check
      _
    $region143: #{tpu_custom_call.1} parent=1 // pred_check_branch
      %1568 = sbr.rel (0) target = $region145
    $region144: #{tpu_custom_call.1} parent=1 // pred_region
      %s1570 = ssub.s32 128, 128
      %1571 = vsyncadd [#allocation25], %s1570
      %s1573 = sshll.u32 [#allocation24], 4
      %s1574 = int_to_ptr.vmem [resolvable:$true] %s1573
      %1576 = dma.vmem_to_hbm [thread:$0]  %s1574, 128, %s25, [#allocation25]
    $region145: #{tpu_custom_call.1} parent=1 // pred_fallthru
      _
    // Predicated region
    $region146: #{tpu_custom_call.1} parent=1 // pred_check
      _
    $region147: #{tpu_custom_call.1} parent=1 // pred_check_branch
      %1578 = sbr.rel (0) target = $region149
    $region148: #{tpu_custom_call.1} parent=1 // pred_region
      %s1580 = ssub.s32 128, 128
      %1581 = vsyncadd [#allocation25], %s1580
      %s1583 = sshll.u32 [#allocation26], 4
      %s1584 = int_to_ptr.vmem [resolvable:$true] %s1583
      %1586 = dma.vmem_to_hbm [thread:$0]  %s1584, 128, %s26, [#allocation25]
    $region149: #{tpu_custom_call.1} parent=1 // pred_fallthru
      _
    // Predicated region
    $region150: #{tpu_custom_call.1} parent=1 // pred_check
      _
    $region151: #{tpu_custom_call.1} parent=1 // pred_check_branch
      %1588 = sbr.rel (0) target = $region153
    $region152: #{tpu_custom_call.1} parent=1 // pred_region
      _
    $region153: #{tpu_custom_call.1} parent=1 // pred_fallthru
      _
    // Predicated region
    $region154: #{tpu_custom_call.1} parent=1 // pred_check
      _
    $region155: #{tpu_custom_call.1} parent=1 // pred_check_branch
      %1590 = sbr.rel (0) target = $region157
    $region156: #{tpu_custom_call.1} parent=1 // pred_region
      %s1592 = ssub.s32 64, 64
      %1593 = vsyncadd [#allocation28], %s1592
      %s1595 = sshll.u32 [#allocation27], 4
      %s1596 = int_to_ptr.vmem [resolvable:$true] %s1595
      %1598 = dma.vmem_to_hbm [thread:$0]  %s1596, 64, %s28, [#allocation28]
    $region157: #{tpu_custom_call.1} parent=1 // pred_fallthru
      _
    // Predicated region
    $region158: #{tpu_custom_call.1} parent=1 // pred_check
      _
    $region159: #{tpu_custom_call.1} parent=1 // pred_check_branch
      %1600 = sbr.rel (0) target = $region161
    $region160: #{tpu_custom_call.1} parent=1 // pred_region
      %1601 = dma.done [#allocation5], 128
    $region161: #{tpu_custom_call.1} parent=1 // pred_fallthru
      _
    // Predicated region
    $region162: #{tpu_custom_call.1} parent=1 // pred_check
      _
    $region163: #{tpu_custom_call.1} parent=1 // pred_check_branch
      %1603 = sbr.rel (0) target = $region165
    $region164: #{tpu_custom_call.1} parent=1 // pred_region
      %1604 = dma.done [#allocation22], 128
    $region165: #{tpu_custom_call.1} parent=1 // pred_fallthru
      _
    // Predicated region
    $region166: #{tpu_custom_call.1} parent=1 // pred_check
      _
    $region167: #{tpu_custom_call.1} parent=1 // pred_check_branch
      %1606 = sbr.rel (0) target = $region169
    $region168: #{tpu_custom_call.1} parent=1 // pred_region
      %1607 = dma.done [#allocation22], 128
    $region169: #{tpu_custom_call.1} parent=1 // pred_fallthru
      _
    // Predicated region
    $region170: #{tpu_custom_call.1} parent=1 // pred_check
      _
    $region171: #{tpu_custom_call.1} parent=1 // pred_check_branch
      %1609 = sbr.rel (0) target = $region173
    $region172: #{tpu_custom_call.1} parent=1 // pred_region
      %1610 = dma.done [#allocation25], 128
    $region173: #{tpu_custom_call.1} parent=1 // pred_fallthru
      _
    // Predicated region
    $region174: #{tpu_custom_call.1} parent=1 // pred_check
      _
    $region175: #{tpu_custom_call.1} parent=1 // pred_check_branch
      %1612 = sbr.rel (0) target = $region177
    $region176: #{tpu_custom_call.1} parent=1 // pred_region
      %1613 = dma.done [#allocation25], 128
    $region177: #{tpu_custom_call.1} parent=1 // pred_fallthru
      _
    // Predicated region
    $region178: #{tpu_custom_call.1} parent=1 // pred_check
      _
    $region179: #{tpu_custom_call.1} parent=1 // pred_check_branch
      %1615 = sbr.rel (0) target = $region181
    $region180: #{tpu_custom_call.1} parent=1 // pred_region
      _
    $region181: #{tpu_custom_call.1} parent=1 // pred_fallthru
      _
    // Predicated region
    $region182: #{tpu_custom_call.1} parent=1 // pred_check
      _
    $region183: #{tpu_custom_call.1} parent=1 // pred_check_branch
      %1617 = sbr.rel (0) target = $region185
    $region184: #{tpu_custom_call.1} parent=1 // pred_region
      %1618 = dma.done [#allocation28], 64
    $region185: #{tpu_custom_call.1} parent=1 // pred_fallthru
      _
    %1619 = vsyncpa [#allocation4], 1
    %1620 = vsyncpa [#allocation7], 1
    %1621 = vsyncpa [#allocation10], 1
    %1622 = vsyncpa [#allocation13], 1
    %1623 = vsyncpa [#allocation16], 1
    %1624 = vsyncpa [#allocation19], 1
    %1625 = vsyncpa [#allocation5], 1
    %1626 = vsyncpa [#allocation22], 1
    %1627 = vsyncpa [#allocation25], 1
    %1628 = vsyncpa [#allocation28], 1

</llo_original>
